<compile_context>
chip_gen: v7x
topology: tpu7x:2x2x1
jax: 0.10.0
libtpu: 0.0.40
codegen_flags: <defaults>
</compile_context>

<pallas_src>
import functools

import jax
import jax.numpy as jnp
from jax.experimental import pallas as pl
from jax.experimental.pallas import tpu as pltpu

KSIZE = 7


def residual_unit_kernel(x_ref, halo_ref, w1_ref, w2_ref, vec_ref, o_ref, win_ref,
                         *, dilation, t_tile, pad, lpad, conv_mode, mxu_dtype):
    f32 = jnp.float32

    # merged per-channel vectors: [a1, 1/a1, a2, 1/a2, b1, b2], each (C, 1)
    a1, inv_a1 = vec_ref[:, 0:1], vec_ref[:, 1:2]
    a2, inv_a2 = vec_ref[:, 2:3], vec_ref[:, 3:4]
    b1, b2 = vec_ref[:, 4:5], vec_ref[:, 5:6]

    # --- assemble the halo window in VMEM ------------------------------------
    # layout: [ unused(lpad-pad) | left halo(pad) | main tile(t_tile) | right halo(pad) ]
    # main tile lands at lane offset `lpad` (multiple of 128 -> aligned stores).
    x_tile = x_ref[0]                                               # (C, t_tile)
    win_ref[:, lpad:lpad + t_tile] = x_tile.astype(f32)
    win_ref[:, lpad - pad:lpad] = halo_ref[0, 0, :, :pad].astype(f32)
    win_ref[:, lpad + t_tile:lpad + t_tile + pad] = halo_ref[0, 0, :, pad:].astype(f32)

    # --- Snake1d #1 on the window, cast ONCE to the MXU dtype ----------------
    w = win_ref[...]
    s1 = (w + inv_a1 * jnp.square(jnp.sin(a1 * w))).astype(mxu_dtype)

    base = lpad - pad  # window column of tap k=0 for output column 0

    # --- dilated k=7 conv -----------------------------------------------------
    if conv_mode == "im2col":
        # Stack the 7 dilated taps along the contraction axis (already in MXU
        # dtype) -> (7*C, t_tile); one MXU matmul with the (C, 7*C) weight.
        cols = jnp.concatenate(
            [s1[:, base + k * dilation: base + k * dilation + t_tile]
             for k in range(KSIZE)], axis=0)
        h = jnp.dot(w1_ref[...], cols, preferred_element_type=f32) + b1
    else:
        # 7 MXU-accumulated (C,C) x (C,t_tile) matmuls; no (7C, t) cols scratch.
        h = jnp.dot(w1_ref[0], s1[:, base:base + t_tile],
                    preferred_element_type=f32)
        for k in range(1, KSIZE):
            h = h + jnp.dot(
                w1_ref[k],
                s1[:, base + k * dilation: base + k * dilation + t_tile],
                preferred_element_type=f32)
        h = h + b1

    # --- Snake1d #2 + 1x1 conv + residual -------------------------------------
    s2 = (h + inv_a2 * jnp.square(jnp.sin(a2 * h))).astype(mxu_dtype)
    y = jnp.dot(w2_ref[...], s2, preferred_element_type=f32) + b2
    o_ref[0] = (x_tile.astype(f32) + y).astype(o_ref.dtype)


def _pick_t_tile(T, C):
    # Largest lane-dense tile that divides T, capped at 512 (per-step f32
    # intermediates scale ~20*C*t bytes and 512 already sits near the HBM
    # roofline), dropping to 256 for very wide channel counts.
    cap = 512 if C <= 1024 else 256
    for cand in (cap, 256, 128):
        if cand <= T and T % cand == 0:
            return cand
    return T


def _default_vmem_limit_bytes():
    # Derive the scoped-VMEM budget per chip generation instead of hard-coding
    # 32 MiB (v5e/v6e: 128 MiB physical, v7x: 64 MiB per TensorCore).
    try:
        cap = int(pltpu.get_tpu_info().vmem_capacity_bytes)
    except Exception:
        cap = 64 * 1024 * 1024
    return min((cap * 3) // 4, 96 * 1024 * 1024)


def residual_unit(x, params, dilation=1, t_tile=None, mxu_dtype=jnp.bfloat16,
                  conv_mode=None):
    B, C, T = x.shape
    pad = (KSIZE - 1) * dilation // 2

    if t_tile is None:
        t_tile = _pick_t_tile(T, C)
    assert T % t_tile == 0, f"t_tile={t_tile} must divide T={T}"
    assert pad <= t_tile, "conv halo must fit inside one neighbouring tile"
    n_t = T // t_tile
    lpad = -(-pad // 128) * 128                 # main tile lane-aligned offset

    if conv_mode is None:
        # small C: one fused (C,7C)x(7C,t) matmul keeps the MXU K-pipe busy;
        # large C: 7 accumulated (C,C)x(C,t) matmuls avoid the (7C,t) scratch.
        conv_mode = "accumulate" if C >= 128 else "im2col"

    # --- tiny per-tile halo side input (replaces the full jnp.pad pass) ------
    tiles = x.reshape(B, C, n_t, t_tile)
    zeros = jnp.zeros((B, C, 1, pad), x.dtype)
    left = jnp.concatenate([zeros, tiles[:, :, :-1, t_tile - pad:]], axis=2)
    right = jnp.concatenate([tiles[:, :, 1:, :pad], zeros], axis=2)
    halos = jnp.transpose(jnp.concatenate([left, right], axis=3), (0, 2, 1, 3))
    # halos: (B, n_t, C, 2*pad), zero-filled at the sequence edges.

    # --- fold conv weights for the chosen path --------------------------------
    if conv_mode == "im2col":
        # (Cout, Cin, K) -> (Cout, K*Cin), k-major to match the in-kernel im2col.
        w1 = jnp.transpose(params["w1"], (0, 2, 1)).reshape(C, KSIZE * C)
        w1 = w1.astype(mxu_dtype)
        w1_spec = pl.BlockSpec((C, KSIZE * C), lambda b, j: (0, 0))
    else:
        w1 = jnp.transpose(params["w1"], (2, 0, 1)).astype(mxu_dtype)  # (K, Cout, Cin)
        w1_spec = pl.BlockSpec((KSIZE, C, C), lambda b, j: (0, 0, 0))
    w2 = params["w2"].astype(mxu_dtype)

    # Merged per-channel vectors; alpha reciprocals precomputed in the wrapper
    # (no per-step divide in the kernel).
    eps = 1e-9
    vecs = jnp.concatenate(
        [params["alpha1"], 1.0 / (params["alpha1"] + eps),
         params["alpha2"], 1.0 / (params["alpha2"] + eps),
         params["b1"][:, None], params["b2"][:, None]],
        axis=1).astype(jnp.float32)                                   # (C, 6)

    kernel = functools.partial(
        residual_unit_kernel, dilation=dilation, t_tile=t_tile, pad=pad,
        lpad=lpad, conv_mode=conv_mode, mxu_dtype=mxu_dtype)

    # TODO(synk): single-buffer the three grid-invariant weight blocks
    # (pipeline_mode=pl.Buffered(1)) once verified on this jax version; they
    # are never re-fetched but are still double-buffer-allocated by default.
    return pl.pallas_call(
        kernel,
        out_shape=jax.ShapeDtypeStruct((B, C, T), x.dtype),
        grid_spec=pltpu.PrefetchScalarGridSpec(
            num_scalar_prefetch=0,
            grid=(B, n_t),
            in_specs=[
                # main x tile (auto-pipelined; also feeds the residual add)
                pl.BlockSpec((1, C, t_tile), lambda b, j: (b, 0, j)),
                # per-tile halo columns (tiny)
                pl.BlockSpec((1, 1, C, 2 * pad), lambda b, j: (b, j, 0, 0)),
                # dilated-conv weight (layout depends on conv_mode)
                w1_spec,
                # 1x1 conv weight (C, C)
                pl.BlockSpec((C, C), lambda b, j: (0, 0)),
                # merged per-channel vectors (C, 6)
                pl.BlockSpec((C, 6), lambda b, j: (0, 0)),
            ],
            out_specs=pl.BlockSpec((1, C, t_tile), lambda b, j: (b, 0, j)),
            scratch_shapes=[
                pltpu.VMEM((C, lpad + t_tile + pad), jnp.float32),
            ],
        ),
        compiler_params=pltpu.CompilerParams(
            dimension_semantics=("parallel", "parallel"),
            vmem_limit_bytes=_default_vmem_limit_bytes(),
        ),
    )(x, halos, w1, w2, vecs)


def _fold_weight_norm(v, g):
    # weight_norm (dim=0): w = g * v / ||v||, norm over all dims except out-channels
    axes = tuple(range(1, v.ndim))
    norm = jnp.sqrt(jnp.sum(v * v, axis=axes, keepdims=True))
    return g.reshape((-1,) + (1,) * (v.ndim - 1)) * v / norm


def make_params(dim, key):
    ks = jax.random.split(key, 8)
    v1 = jax.random.normal(ks[0], (dim, dim, KSIZE), jnp.float32) * 0.1
    g1 = 1.0 + 0.1 * jax.random.normal(ks[1], (dim,), jnp.float32)
    b1 = 0.1 * jax.random.normal(ks[2], (dim,), jnp.float32)
    v2 = jax.random.normal(ks[3], (dim, dim, 1), jnp.float32) * 0.1
    g2 = 1.0 + 0.1 * jax.random.normal(ks[4], (dim,), jnp.float32)
    b2 = 0.1 * jax.random.normal(ks[5], (dim,), jnp.float32)
    alpha1 = 1.0 + 0.1 * jax.random.normal(ks[6], (dim, 1), jnp.float32)
    alpha2 = 1.0 + 0.1 * jax.random.normal(ks[7], (dim, 1), jnp.float32)
    return {
        "w1": _fold_weight_norm(v1, g1),           # (C, C, 7)
        "b1": b1,
        "w2": _fold_weight_norm(v2, g2)[:, :, 0],  # (C, C)
        "b2": b2,
        "alpha1": alpha1,
        "alpha2": alpha2,
    }


def reference_forward(x, params, dilation=1):
    a1 = params["alpha1"][None]                    # (1, C, 1)
    a2 = params["alpha2"][None]
    pad = (KSIZE - 1) * dilation // 2

    def snake(z, a):
        return z + (1.0 / (a + 1e-9)) * jnp.square(jnp.sin(a * z))

    s1 = snake(x, a1)
    h = jax.lax.conv_general_dilated(
        s1, params["w1"], window_strides=(1,), padding=[(pad, pad)],
        rhs_dilation=(dilation,), dimension_numbers=("NCH", "OIH", "NCH"))
    h = h + params["b1"][None, :, None]
    s2 = snake(h, a2)
    y = jnp.einsum("oi,bit->bot", params["w2"], s2) + params["b2"][None, :, None]
    return x + y


if __name__ == "__main__":
    key = jax.random.PRNGKey(0)
    kx, kp = jax.random.split(key)

    B, C, T = 2, 16, 256
    x = jax.random.normal(kx, (B, C, T), jnp.float32)
    params = make_params(C, kp)

    # 1) default config: bf16 MXU operands, auto tile size, dilation 1
    out = jax.block_until_ready(residual_unit(x, params, dilation=1))
    ref = jax.block_until_ready(reference_forward(x, params, dilation=1))
    assert out.shape == (B, C, T)
    err = jnp.max(jnp.abs(out - ref))
    assert jnp.allclose(out, ref, atol=1e-1, rtol=5e-2), f"bf16 path max err {err}"

    # 2) halo-tiled time axis (n_t=2), fused im2col path, bf16 MXU
    out2 = jax.block_until_ready(
        residual_unit(x, params, dilation=1, t_tile=128, conv_mode="im2col"))
    err2 = jnp.max(jnp.abs(out2 - ref))
    assert jnp.allclose(out2, ref, atol=1e-1, rtol=5e-2), f"halo im2col max err {err2}"

    # 3) halo-tiled, 7-matmul accumulate path, dilated conv (d=3), exact f32 MXU
    out3 = jax.block_until_ready(
        residual_unit(x, params, dilation=3, t_tile=128,
                      mxu_dtype=jnp.float32, conv_mode="accumulate"))
    ref3 = jax.block_until_ready(reference_forward(x, params, dilation=3))
    err3 = jnp.max(jnp.abs(out3 - ref3))
    assert jnp.allclose(out3, ref3, atol=1e-4, rtol=1e-4), f"f32 path max err {err3}"

    print("KERNEL_OK")
</pallas_src>

<mosaic_0001>
module attributes {stable_mosaic.version = 11 : i64} {
  func.func @residual_unit_kernel(%arg0: i32, %arg1: i32, %arg2: memref<1x16x256xf32, #tpu.memory_space<vmem>>, %arg3: memref<1x1x16x6xf32, #tpu.memory_space<vmem>>, %arg4: memref<16x112xbf16, #tpu.memory_space<vmem>>, %arg5: memref<16x16xbf16, #tpu.memory_space<vmem>>, %arg6: memref<16x6xf32, #tpu.memory_space<vmem>>, %arg7: memref<1x16x256xf32, #tpu.memory_space<vmem>>, %arg8: memref<16x387xf32, #tpu.memory_space<vmem>>) attributes {dimension_semantics = [#tpu.dimension_semantics<parallel>, #tpu.dimension_semantics<parallel>], iteration_bounds = array<i64: 2, 1>, scalar_prefetch = 0 : i64, scratch_operands = 1 : i64, tpu.core_type = #tpu.core_type<tc>, window_params = [{transform_indices = @transform_0, window_bounds = array<i64: 1, 16, 256>}, {transform_indices = @transform_1, window_bounds = array<i64: 1, 1, 16, 6>}, {pipeline_mode = #tpu.pipeline_mode<synchronous>, transform_indices = @transform_2, window_bounds = array<i64: 16, 112>}, {pipeline_mode = #tpu.pipeline_mode<synchronous>, transform_indices = @transform_3, window_bounds = array<i64: 16, 16>}, {pipeline_mode = #tpu.pipeline_mode<synchronous>, transform_indices = @transform_4, window_bounds = array<i64: 16, 6>}, {transform_indices = @transform_5, window_bounds = array<i64: 1, 16, 256>}]} {
    %c0 = arith.constant 0 : index
    %c0_0 = arith.constant 0 : index
    %0 = vector.load %arg6[%c0, %c0_0] : memref<16x6xf32, #tpu.memory_space<vmem>>, vector<16x1xf32>
    %c0_1 = arith.constant 0 : index
    %c1 = arith.constant 1 : index
    %1 = vector.load %arg6[%c0_1, %c1] : memref<16x6xf32, #tpu.memory_space<vmem>>, vector<16x1xf32>
    %c0_2 = arith.constant 0 : index
    %c2 = arith.constant 2 : index
    %2 = vector.load %arg6[%c0_2, %c2] : memref<16x6xf32, #tpu.memory_space<vmem>>, vector<16x1xf32>
    %c0_3 = arith.constant 0 : index
    %c3 = arith.constant 3 : index
    %3 = vector.load %arg6[%c0_3, %c3] : memref<16x6xf32, #tpu.memory_space<vmem>>, vector<16x1xf32>
    %c0_4 = arith.constant 0 : index
    %c4 = arith.constant 4 : index
    %4 = vector.load %arg6[%c0_4, %c4] : memref<16x6xf32, #tpu.memory_space<vmem>>, vector<16x1xf32>
    %c0_5 = arith.constant 0 : index
    %c5 = arith.constant 5 : index
    %5 = vector.load %arg6[%c0_5, %c5] : memref<16x6xf32, #tpu.memory_space<vmem>>, vector<16x1xf32>
    %c0_6 = arith.constant 0 : index
    %c0_7 = arith.constant 0 : index
    %c0_8 = arith.constant 0 : index
    %6 = vector.load %arg2[%c0_6, %c0_7, %c0_8] : memref<1x16x256xf32, #tpu.memory_space<vmem>>, vector<1x16x256xf32>
    %7 = vector.shape_cast %6 : vector<1x16x256xf32> to vector<16x256xf32>
    %c0_9 = arith.constant 0 : index
    %c128 = arith.constant 128 : index
    %8 = vector.load %arg8[%c0_9, %c128] : memref<16x387xf32, #tpu.memory_space<vmem>>, vector<16x256xf32>
    tpu.vector_store %arg8[%c0_9, %c128], %7 {strides = array<i32>} : memref<16x387xf32, #tpu.memory_space<vmem>>, vector<16x256xf32>,
    %c0_10 = arith.constant 0 : index
    %c0_11 = arith.constant 0 : index
    %c0_12 = arith.constant 0 : index
    %c0_13 = arith.constant 0 : index
    %9 = vector.load %arg3[%c0_10, %c0_11, %c0_12, %c0_13] : memref<1x1x16x6xf32, #tpu.memory_space<vmem>>, vector<1x1x16x3xf32>
    %10 = vector.shape_cast %9 : vector<1x1x16x3xf32> to vector<16x3xf32>
    %c0_14 = arith.constant 0 : index
    %c125 = arith.constant 125 : index
    %11 = vector.load %arg8[%c0_14, %c125] : memref<16x387xf32, #tpu.memory_space<vmem>>, vector<16x3xf32>
    tpu.vector_store %arg8[%c0_14, %c125], %10 {strides = array<i32>} : memref<16x387xf32, #tpu.memory_space<vmem>>, vector<16x3xf32>,
    %c0_15 = arith.constant 0 : index
    %c0_16 = arith.constant 0 : index
    %c0_17 = arith.constant 0 : index
    %c3_18 = arith.constant 3 : index
    %12 = vector.load %arg3[%c0_15, %c0_16, %c0_17, %c3_18] : memref<1x1x16x6xf32, #tpu.memory_space<vmem>>, vector<1x1x16x3xf32>
    %13 = vector.shape_cast %12 : vector<1x1x16x3xf32> to vector<16x3xf32>
    %c0_19 = arith.constant 0 : index
    %c384 = arith.constant 384 : index
    %14 = vector.load %arg8[%c0_19, %c384] : memref<16x387xf32, #tpu.memory_space<vmem>>, vector<16x3xf32>
    tpu.vector_store %arg8[%c0_19, %c384], %13 {strides = array<i32>} : memref<16x387xf32, #tpu.memory_space<vmem>>, vector<16x3xf32>,
    %c0_20 = arith.constant 0 : index
    %c0_21 = arith.constant 0 : index
    %15 = vector.load %arg8[%c0_20, %c0_21] : memref<16x387xf32, #tpu.memory_space<vmem>>, vector<16x387xf32>
    %16 = vector.broadcast %0 : vector<16x1xf32> to vector<16x387xf32>
    %17 = arith.mulf %16, %15 : vector<16x387xf32>
    %18 = math.sin %17 : vector<16x387xf32>
    %19 = arith.mulf %18, %18 : vector<16x387xf32>
    %20 = vector.broadcast %1 : vector<16x1xf32> to vector<16x387xf32>
    %21 = arith.mulf %20, %19 : vector<16x387xf32>
    %22 = arith.addf %15, %21 : vector<16x387xf32>
    %23 = arith.truncf %22 : vector<16x387xf32> to vector<16x387xbf16>
    %24 = vector.extract_strided_slice %23 {offsets = [0, 125], sizes = [16, 256], strides = [1, 1]} : vector<16x387xbf16> to vector<16x256xbf16>
    %25 = vector.extract_strided_slice %23 {offsets = [0, 126], sizes = [16, 256], strides = [1, 1]} : vector<16x387xbf16> to vector<16x256xbf16>
    %26 = vector.extract_strided_slice %23 {offsets = [0, 127], sizes = [16, 256], strides = [1, 1]} : vector<16x387xbf16> to vector<16x256xbf16>
    %27 = vector.extract_strided_slice %23 {offsets = [0, 128], sizes = [16, 256], strides = [1, 1]} : vector<16x387xbf16> to vector<16x256xbf16>
    %28 = vector.extract_strided_slice %23 {offsets = [0, 129], sizes = [16, 256], strides = [1, 1]} : vector<16x387xbf16> to vector<16x256xbf16>
    %29 = vector.extract_strided_slice %23 {offsets = [0, 130], sizes = [16, 256], strides = [1, 1]} : vector<16x387xbf16> to vector<16x256xbf16>
    %30 = vector.extract_strided_slice %23 {offsets = [0, 131], sizes = [16, 256], strides = [1, 1]} : vector<16x387xbf16> to vector<16x256xbf16>
    %31 = tpu.concatenate %24, %25, %26, %27, %28, %29, %30 in 0 : vector<16x256xbf16>, vector<16x256xbf16>, vector<16x256xbf16>, vector<16x256xbf16>, vector<16x256xbf16>, vector<16x256xbf16>, vector<16x256xbf16> -> vector<112x256xbf16>
    %c0_22 = arith.constant 0 : index
    %c0_23 = arith.constant 0 : index
    %32 = vector.load %arg4[%c0_22, %c0_23] : memref<16x112xbf16, #tpu.memory_space<vmem>>, vector<16x112xbf16>
    %cst = arith.constant dense<0.000000e+00> : vector<16x256xf32>
    %33 = tpu.matmul %32, %31, %cst {dimension_numbers = #tpu.dot_dimension_numbers<[1], [0], [0], [1], [0, 0, 1, 1], [], []>} : vector<16x112xbf16>, vector<112x256xbf16>, vector<16x256xf32> -> vector<16x256xf32>
    %34 = vector.broadcast %4 : vector<16x1xf32> to vector<16x256xf32>
    %35 = arith.addf %33, %34 : vector<16x256xf32>
    %36 = vector.broadcast %2 : vector<16x1xf32> to vector<16x256xf32>
    %37 = arith.mulf %36, %35 : vector<16x256xf32>
    %38 = math.sin %37 : vector<16x256xf32>
    %39 = arith.mulf %38, %38 : vector<16x256xf32>
    %40 = vector.broadcast %3 : vector<16x1xf32> to vector<16x256xf32>
    %41 = arith.mulf %40, %39 : vector<16x256xf32>
    %42 = arith.addf %35, %41 : vector<16x256xf32>
    %43 = arith.truncf %42 : vector<16x256xf32> to vector<16x256xbf16>
    %c0_24 = arith.constant 0 : index
    %c0_25 = arith.constant 0 : index
    %44 = vector.load %arg5[%c0_24, %c0_25] : memref<16x16xbf16, #tpu.memory_space<vmem>>, vector<16x16xbf16>
    %cst_26 = arith.constant dense<0.000000e+00> : vector<16x256xf32>
    %45 = tpu.matmul %44, %43, %cst_26 {dimension_numbers = #tpu.dot_dimension_numbers<[1], [0], [0], [1], [0, 0, 1, 1], [], []>} : vector<16x16xbf16>, vector<16x256xbf16>, vector<16x256xf32> -> vector<16x256xf32>
    %46 = vector.broadcast %5 : vector<16x1xf32> to vector<16x256xf32>
    %47 = arith.addf %45, %46 : vector<16x256xf32>
    %48 = arith.addf %7, %47 : vector<16x256xf32>
    %c0_27 = arith.constant 0 : index
    %c0_28 = arith.constant 0 : index
    %c0_29 = arith.constant 0 : index
    %49 = vector.load %arg7[%c0_27, %c0_28, %c0_29] : memref<1x16x256xf32, #tpu.memory_space<vmem>>, vector<1x16x256xf32>
    %50 = vector.shape_cast %49 : vector<1x16x256xf32> to vector<16x256xf32>
    %51 = vector.shape_cast %48 : vector<16x256xf32> to vector<1x16x256xf32>
    tpu.vector_store %arg7[%c0_27, %c0_28, %c0_29], %51 {strides = array<i32>} : memref<1x16x256xf32, #tpu.memory_space<vmem>>, vector<1x16x256xf32>,
    return
  }
  func.func @transform_0(%arg0: i32, %arg1: i32) -> (i32, i32, i32) {
    %c0_i32 = arith.constant 0 : i32
    %c0_i32_0 = arith.constant 0 : i32
    return %arg0, %c0_i32, %arg1 : i32, i32, i32
  }
  func.func @transform_1(%arg0: i32, %arg1: i32) -> (i32, i32, i32, i32) {
    %c0_i32 = arith.constant 0 : i32
    %c0_i32_0 = arith.constant 0 : i32
    %c0_i32_1 = arith.constant 0 : i32
    return %arg0, %arg1, %c0_i32, %c0_i32_0 : i32, i32, i32, i32
  }
  func.func @transform_2(%arg0: i32, %arg1: i32) -> (i32, i32) {
    %c0_i32 = arith.constant 0 : i32
    %c0_i32_0 = arith.constant 0 : i32
    %c0_i32_1 = arith.constant 0 : i32
    return %c0_i32, %c0_i32_0 : i32, i32
  }
  func.func @transform_3(%arg0: i32, %arg1: i32) -> (i32, i32) {
    %c0_i32 = arith.constant 0 : i32
    %c0_i32_0 = arith.constant 0 : i32
    %c0_i32_1 = arith.constant 0 : i32
    return %c0_i32, %c0_i32_0 : i32, i32
  }
  func.func @transform_4(%arg0: i32, %arg1: i32) -> (i32, i32) {
    %c0_i32 = arith.constant 0 : i32
    %c0_i32_0 = arith.constant 0 : i32
    %c0_i32_1 = arith.constant 0 : i32
    return %c0_i32, %c0_i32_0 : i32, i32
  }
  func.func @transform_5(%arg0: i32, %arg1: i32) -> (i32, i32, i32) {
    %c0_i32 = arith.constant 0 : i32
    %c0_i32_0 = arith.constant 0 : i32
    return %arg0, %c0_i32, %arg1 : i32, i32, i32
  }
}

</mosaic_0001>

<llo_original>
// kernel: tpu_custom_call.1
$region0: #{tpu_custom_call.1}
  #allocation0 [shape = 'u32[]', space=smem, size = 0x4, offset = 0x4, fixed_abs, tag = 'smem constant byte address 0x4 - core index']
  #allocation1 [shape = 'u32[144,128]{1,0:T(1,128)}', space=vmem, size = 0x12000, scoped, tag = 'internal scratch']
  #allocation2 [shape = 'f32[16,387]{1,0:T(8,128)}', space=vmem, size = 0x8000, scoped, tag = 'scratch operand']
  %s0 = inlined_call_operand.vmem [shape: f32[2,16,256], index: 0, kind: input, shape index: {}]
  %s1 = inlined_call_operand.vmem [shape: f32[2,1,16,6], index: 1, kind: input, shape index: {}]
  %s2 = inlined_call_operand.vmem [shape: bf16[16,112], index: 2, kind: input, shape index: {}]
  %s3 = inlined_call_operand.hbm [shape: bf16[16,16], index: 3, kind: input, shape index: {}]
  %s4 = inlined_call_operand.vmem [shape: f32[16,6], index: 4, kind: input, shape index: {}]
  %s5 = inlined_call_operand.hbm [shape: f32[2,16,256], index: 5, kind: output, shape index: {}]
  %s6 = sld [smem:[#allocation0]]
  $region57: #{tpu_custom_call.1} parent=0
    _
  %s8 = ssub.s32 1, %s6
  %s9 = scalar_select 0, %s8, %s6
  $region1: #{tpu_custom_call.1} parent=0
    #allocation3 [shape = 'u8[4096]{0}', space=vmem, size = 0x1000, scoped, tag = 'input window, operand 3, single buffered']
    #allocation4 [shape = 's32[2]{0}', space=sflag, size = 0x8, scoped, tag = 'scoped memory for tpu_custom_call.1']
    #allocation5 [shape = 's32[2]{0}', space=sflag, size = 0x8, scoped, tag = 'scoped memory for tpu_custom_call.1']
    #allocation6 [shape = 'u8[32768]{0}', space=vmem, size = 0x8000, scoped, tag = 'output window, operand 0']
    %10 = vsyncpa [#allocation4], 0
    %11 = vsyncpa [#allocation5], 0
    %s12 = scalar_lea.sflag [#allocation5], 1
    %13 = vsyncpa %s12, 0
    loop: start=0, step=1, limit=4
    $region2: #{tpu_custom_call.1} parent=1 // loop_pre_header
      _
    $region3: #{tpu_custom_call.1} parent=1 // loop_header
      %s15 = sphi 0, %s19
      %p16 = scmp.ge.s32.totalorder %s15, 4
      %s22 = sphi 0, %s34
      %s23 = sphi 0, %s30
      %s24 = sphi 0, %s22
      %s25 = sphi 0, %s23
      %s26 = sphi 0, %s24
      %s27 = sphi 0, %s25
      %s39 = sphi 0, %s41
      %s42 = sphi 0, %s39
      %s43 = sphi 0, %s42
      %s59 = sphi 0, %s43
      %s67 = sphi 0, %s69
      %s70 = sphi 0, %s67
      %s71 = sphi 0, %s70
      %s87 = sphi 0, %s71
      %s91 = sphi 0, %s91
      %s93 = sphi 0, %s91
      %s94 = sphi 0, %s93
      %s108 = sphi 0, %s94
      %s112 = sphi 0, %s112
      %s114 = sphi 0, %s112
      %s115 = sphi 0, %s114
      %s129 = sphi 0, %s115
      %s133 = sphi 0, %s133
      %s135 = sphi 0, %s133
      %s136 = sphi 0, %s135
      %s150 = sphi 0, %s136
      %s158 = sphi 0, %s160
      %s161 = sphi 0, %s158
      %s162 = sphi 0, %s161
      %s178 = sphi 0, %s162
    $region4: #{tpu_custom_call.1} parent=1 // loop_header_branch
      %18 = sbr.rel (%p16) target = $region8
    $region5: #{tpu_custom_call.1} parent=1 // loop_body
      %s20 = ssub.s32 %s15, 1
      %s21 = ssub.s32 %s15, 2
      %s28 = sadd.s32 1, %s23
      %p29 = scmp.ge.s32.totalorder %s28, 1
      %s30 = scalar_select %p29, 0, %s28
      %s31 = sadd.s32 1, %s22
      %s32 = scalar_select %p29, %s31, %s22
      %p33 = scmp.ge.s32.totalorder %s32, 2
      %s34 = scalar_select %p33, 0, %s32
      %s35 = ssub.s32 %s22, %s34
      %s36 = ssub.s32 %s23, %s30
      %s37 = sor.u32 %s35, %s36
      %p38 = scmp.eq.s32.totalorder %s37, 0
      %s40 = sadd.s32 %s39, 1
      %s41 = scalar_select %p38, %s39, %s40
      %p44 = pneg %p38
      %p45 = scmp.eq.s32.totalorder %s15, 1
      %p46 = por %p44, %p45
      %p47 = scmp.ne.s32.totalorder %s39, %s42
      %p48 = scmp.eq.s32.totalorder %s15, 0
      %p49 = por %p47, %p48
      %p50 = scmp.ne.s32.totalorder %s39, %s42
      %p51 = scmp.eq.s32.totalorder %s20, 1
      %p52 = por %p50, %p51
      %p53 = scmp.ne.s32.totalorder %s42, %s43
      %p54 = scmp.eq.s32.totalorder %s20, 0
      %p55 = por %p53, %p54
      %p56 = scmp.ne.s32.totalorder %s42, %s43
      %p57 = scmp.eq.s32.totalorder %s21, 1
      %p58 = por %p56, %p57
      %p60 = scmp.ne.s32.totalorder %s43, %s59
      %p61 = scmp.eq.s32.totalorder %s21, 0
      %p62 = por %p60, %p61
      %s63 = ssub.s32 %s22, %s34
      %s64 = ssub.s32 %s23, %s30
      %s65 = sor.u32 %s63, %s64
      %p66 = scmp.eq.s32.totalorder %s65, 0
      %s68 = sadd.s32 %s67, 1
      %s69 = scalar_select %p66, %s67, %s68
      %p72 = pneg %p66
      %p73 = scmp.eq.s32.totalorder %s15, 1
      %p74 = por %p72, %p73
      %p75 = scmp.ne.s32.totalorder %s67, %s70
      %p76 = scmp.eq.s32.totalorder %s15, 0
      %p77 = por %p75, %p76
      %p78 = scmp.ne.s32.totalorder %s67, %s70
      %p79 = scmp.eq.s32.totalorder %s20, 1
      %p80 = por %p78, %p79
      %p81 = scmp.ne.s32.totalorder %s70, %s71
      %p82 = scmp.eq.s32.totalorder %s20, 0
      %p83 = por %p81, %p82
      %p84 = scmp.ne.s32.totalorder %s70, %s71
      %p85 = scmp.eq.s32.totalorder %s21, 1
      %p86 = por %p84, %p85
      %p88 = scmp.ne.s32.totalorder %s71, %s87
      %p89 = scmp.eq.s32.totalorder %s21, 0
      %p90 = por %p88, %p89
      %s92 = sadd.s32 %s91, 1
      %p95 = scmp.eq.s32.totalorder %s15, 1
      %p96 = scmp.ne.s32.totalorder %s91, %s93
      %p97 = scmp.eq.s32.totalorder %s15, 0
      %p98 = por %p96, %p97
      %p99 = scmp.ne.s32.totalorder %s91, %s93
      %p100 = scmp.eq.s32.totalorder %s20, 1
      %p101 = por %p99, %p100
      %p102 = scmp.ne.s32.totalorder %s93, %s94
      %p103 = scmp.eq.s32.totalorder %s20, 0
      %p104 = por %p102, %p103
      %p105 = scmp.ne.s32.totalorder %s93, %s94
      %p106 = scmp.eq.s32.totalorder %s21, 1
      %p107 = por %p105, %p106
      %p109 = scmp.ne.s32.totalorder %s94, %s108
      %p110 = scmp.eq.s32.totalorder %s21, 0
      %p111 = por %p109, %p110
      %s113 = sadd.s32 %s112, 1
      %p116 = scmp.eq.s32.totalorder %s15, 1
      %p117 = scmp.ne.s32.totalorder %s112, %s114
      %p118 = scmp.eq.s32.totalorder %s15, 0
      %p119 = por %p117, %p118
      %p120 = scmp.ne.s32.totalorder %s112, %s114
      %p121 = scmp.eq.s32.totalorder %s20, 1
      %p122 = por %p120, %p121
      %p123 = scmp.ne.s32.totalorder %s114, %s115
      %p124 = scmp.eq.s32.totalorder %s20, 0
      %p125 = por %p123, %p124
      %p126 = scmp.ne.s32.totalorder %s114, %s115
      %p127 = scmp.eq.s32.totalorder %s21, 1
      %p128 = por %p126, %p127
      %p130 = scmp.ne.s32.totalorder %s115, %s129
      %p131 = scmp.eq.s32.totalorder %s21, 0
      %p132 = por %p130, %p131
      %s134 = sadd.s32 %s133, 1
      %p137 = scmp.eq.s32.totalorder %s15, 1
      %p138 = scmp.ne.s32.totalorder %s133, %s135
      %p139 = scmp.eq.s32.totalorder %s15, 0
      %p140 = por %p138, %p139
      %p141 = scmp.ne.s32.totalorder %s133, %s135
      %p142 = scmp.eq.s32.totalorder %s20, 1
      %p143 = por %p141, %p142
      %p144 = scmp.ne.s32.totalorder %s135, %s136
      %p145 = scmp.eq.s32.totalorder %s20, 0
      %p146 = por %p144, %p145
      %p147 = scmp.ne.s32.totalorder %s135, %s136
      %p148 = scmp.eq.s32.totalorder %s21, 1
      %p149 = por %p147, %p148
      %p151 = scmp.ne.s32.totalorder %s136, %s150
      %p152 = scmp.eq.s32.totalorder %s21, 0
      %p153 = por %p151, %p152
      %s154 = ssub.s32 %s22, %s34
      %s155 = ssub.s32 %s23, %s30
      %s156 = sor.u32 %s154, %s155
      %p157 = scmp.eq.s32.totalorder %s156, 0
      %s159 = sadd.s32 %s158, 1
      %s160 = scalar_select %p157, %s158, %s159
      %p163 = pneg %p157
      %p164 = scmp.eq.s32.totalorder %s15, 1
      %p165 = por %p163, %p164
      %p166 = scmp.ne.s32.totalorder %s158, %s161
      %p167 = scmp.eq.s32.totalorder %s15, 0
      %p168 = por %p166, %p167
      %p169 = scmp.ne.s32.totalorder %s158, %s161
      %p170 = scmp.eq.s32.totalorder %s20, 1
      %p171 = por %p169, %p170
      %p172 = scmp.ne.s32.totalorder %s161, %s162
      %p173 = scmp.eq.s32.totalorder %s20, 0
      %p174 = por %p172, %p173
      %p175 = scmp.ne.s32.totalorder %s161, %s162
      %p176 = scmp.eq.s32.totalorder %s21, 1
      %p177 = por %p175, %p176
      %p179 = scmp.ne.s32.totalorder %s162, %s178
      %p180 = scmp.eq.s32.totalorder %s21, 0
      %p181 = por %p179, %p180
      %p182 = scmp.le.s32.totalorder 1, %s15
      %p183 = scmp.lt.s32.totalorder %s15, 3
      %p184 = pnand %p182, %p183
      %p185 = pneg %p184
      // Predicated region
      $region9: #{tpu_custom_call.1} parent=5 // pred_check
        _
      $region10: #{tpu_custom_call.1} parent=5 // pred_check_branch
        %187 = sbr.rel (%p184) target = $region12
      $region11: #{tpu_custom_call.1} parent=5 // pred_region
        %s188 = ssub.s32 %s15, 1
        // Predicated region
        $region13: #{tpu_custom_call.1} parent=11 // pred_check
          %p189 = pneg %p104
        $region14: #{tpu_custom_call.1} parent=11 // pred_check_branch
          %191 = sbr.rel (%p189) target = $region16
        $region15: #{tpu_custom_call.1} parent=11 // pred_region
          _
        $region16: #{tpu_custom_call.1} parent=11 // pred_fallthru
          _
        // Predicated region
        $region17: #{tpu_custom_call.1} parent=11 // pred_check
          %p192 = pneg %p125
        $region18: #{tpu_custom_call.1} parent=11 // pred_check_branch
          %194 = sbr.rel (%p192) target = $region20
        $region19: #{tpu_custom_call.1} parent=11 // pred_region
          %s196 = ssub.s32 128, 128
          %197 = vsyncadd [#allocation4], %s196
          %s198 = sshll.u32 [#allocation3], 4
          %s199 = int_to_ptr.vmem [resolvable:$true] %s198
          %204 = dma.hbm_to_vmem [thread:$0]  %s3, 128, %s199, [#allocation4], 64, 64, 4
        $region20: #{tpu_custom_call.1} parent=11 // pred_fallthru
          _
        // Predicated region
        $region21: #{tpu_custom_call.1} parent=11 // pred_check
          %p205 = pneg %p146
        $region22: #{tpu_custom_call.1} parent=11 // pred_check_branch
          %207 = sbr.rel (%p205) target = $region24
        $region23: #{tpu_custom_call.1} parent=11 // pred_region
          _
        $region24: #{tpu_custom_call.1} parent=11 // pred_fallthru
          _
      $region12: #{tpu_custom_call.1} parent=5 // pred_fallthru
        _
      %p208 = scmp.lt.s32.totalorder %s15, 2
      // Predicated region
      $region25: #{tpu_custom_call.1} parent=5 // pred_check
        %p209 = pneg %p208
      $region26: #{tpu_custom_call.1} parent=5 // pred_check_branch
        %211 = sbr.rel (%p209) target = $region28
      $region27: #{tpu_custom_call.1} parent=5 // pred_region
        // Predicated region
        $region29: #{tpu_custom_call.1} parent=27 // pred_check
          %p212 = pneg %p49
        $region30: #{tpu_custom_call.1} parent=27 // pred_check_branch
          %214 = sbr.rel (%p212) target = $region32
        $region31: #{tpu_custom_call.1} parent=27 // pred_region
          %s215 = smul.u32 2, %s23
          %p216 = scmp.lt.s32.totalorder %s22, 1
          %s217 = scalar_select %p216, %s22, 1
          %p218 = scmp.lt.s32.totalorder %s215, 1
          %s219 = scalar_select %p218, %s215, 1
          %s220 = smul.addr %s217, 4
          %s221 = sadd.s32 %s219, %s220
          %s222 = smul.addr %s221, 8
          %s223 = scalar_lea.vmem %s0, %s222
          %s224 = smul.u32 2, %s23
        $region32: #{tpu_custom_call.1} parent=27 // pred_fallthru
          _
        // Predicated region
        $region33: #{tpu_custom_call.1} parent=27 // pred_check
          %p225 = pneg %p77
        $region34: #{tpu_custom_call.1} parent=27 // pred_check_branch
          %227 = sbr.rel (%p225) target = $region36
        $region35: #{tpu_custom_call.1} parent=27 // pred_region
          %p228 = scmp.lt.s32.totalorder %s22, 1
          %s229 = scalar_select %p228, %s22, 1
          %p230 = scmp.lt.s32.totalorder %s23, 0
          %s231 = scalar_select %p230, %s23, 0
          %s232 = smul.addr %s231, 2
          %s233 = smul.addr %s229, 2
          %s234 = sadd.s32 %s232, %s233
          %s235 = smul.addr %s234, 8
          %s236 = scalar_lea.vmem %s1, %s235
        $region36: #{tpu_custom_call.1} parent=27 // pred_fallthru
          _
      $region28: #{tpu_custom_call.1} parent=5 // pred_fallthru
        _
      %p237 = scmp.le.s32.totalorder 1, %s15
      %p238 = scmp.lt.s32.totalorder %s15, 3
      %p239 = pnand %p237, %p238
      %p240 = pneg %p239
      // Predicated region
      $region37: #{tpu_custom_call.1} parent=5 // pred_check
        _
      $region38: #{tpu_custom_call.1} parent=5 // pred_check_branch
        %242 = sbr.rel (%p239) target = $region40
      $region39: #{tpu_custom_call.1} parent=5 // pred_region
        %s243 = ssub.s32 %s15, 1
        // Predicated region
        $region41: #{tpu_custom_call.1} parent=39 // pred_check
          %p244 = pneg %p125
        $region42: #{tpu_custom_call.1} parent=39 // pred_check_branch
          %246 = sbr.rel (%p244) target = $region44
        $region43: #{tpu_custom_call.1} parent=39 // pred_region
          %247 = dma.done [#allocation4], 128
        $region44: #{tpu_custom_call.1} parent=39 // pred_fallthru
          _
        %s248 = smul.u32 2, %s25
        %p249 = scmp.lt.s32.totalorder %s24, 1
        %s250 = scalar_select %p249, %s24, 1
        %p251 = scmp.lt.s32.totalorder %s248, 1
        %s252 = scalar_select %p251, %s248, 1
        %s253 = smul.addr %s250, 4
        %s254 = sadd.s32 %s252, %s253
        %s255 = smul.addr %s254, 8
        %s256 = scalar_lea.vmem %s0, %s255
        %p257 = pneg %p55
        %p258 = pneg %p52
        %p259 = scmp.lt.s32.totalorder %s24, 1
        %s260 = scalar_select %p259, %s24, 1
        %p261 = scmp.lt.s32.totalorder %s25, 0
        %s262 = scalar_select %p261, %s25, 0
        %s263 = smul.addr %s262, 2
        %s264 = smul.addr %s260, 2
        %s265 = sadd.s32 %s263, %s264
        %s266 = smul.addr %s265, 8
        %s267 = scalar_lea.vmem %s1, %s266
        %p268 = pneg %p83
        %p269 = pneg %p80
        %p270 = pneg %p104
        %p271 = pneg %p101
        %p272 = pneg %p125
        %p273 = pneg %p122
        %p274 = pneg %p146
        %p275 = pneg %p143
        %p276 = pneg %p174
        %p277 = pneg %p171
        %s278 = sand.u32 %s161, 1
        %s279 = scalar_lea.sflag [#allocation5], %s278
        %s280 = sand.u32 %s161, 1
        %s281 = smul.addr %s280, 32
        %s282 = scalar_lea.vmem [#allocation6], %s281
        %s283 = smul.u32 2, %s25
        %p284 = scmp.lt.s32.totalorder %s24, 1
        %s285 = scalar_select %p284, %s24, 1
        %p286 = scmp.lt.s32.totalorder %s283, 1
        %s287 = scalar_select %p286, %s283, 1
        %s288 = smul.addr %s285, 4
        %s289 = sadd.s32 %s287, %s288
        %s290 = smul.addr %s289, 8
        %s291 = scalar_lea.vmem %s0, %s290
        %s292 = smul.u32 2, %s25
        %p293 = scmp.lt.s32.totalorder %s24, 1
        %s294 = scalar_select %p293, %s24, 1
        %p295 = scmp.lt.s32.totalorder %s25, 0
        %s296 = scalar_select %p295, %s25, 0
        %s297 = smul.addr %s296, 2
        %s298 = smul.addr %s294, 2
        %s299 = sadd.s32 %s297, %s298
        %s300 = smul.addr %s299, 8
        %s301 = scalar_lea.vmem %s1, %s300
        %s302 = smul.u32 2, %s25
        %v304 = vld [vmem:[%s4] sm:$0xff]
        %v305 = vld [vmem:[%s4 + $0x8] sm:$0xff]
        %v306 = vld [vmem:[%s291] sm:$0xff]
        %v307 = vld [vmem:[%s291 + $0x8] sm:$0xff]
        %v308 = vld [vmem:[%s291 + $0x10] sm:$0xff]
        %v309 = vld [vmem:[%s291 + $0x18] sm:$0xff]
        %310 = vst [vmem:[#allocation2 + $0x8] sm:$0xff] %v306
        %311 = vst [vmem:[#allocation2 + $0x10] sm:$0xff] %v307
        %312 = vst [vmem:[#allocation2 + $0x28] sm:$0xff] %v308
        %313 = vst [vmem:[#allocation2 + $0x30] sm:$0xff] %v309
        %v314 = vld [vmem:[%s301] sm:$0xff]
        %v315 = vld [vmem:[%s301 + $0x8] sm:$0xff]
        %318 = vrot.lane.b32.xlu0 %v314, 125
        %v319 = vpop.permute.xlu0 %318
        %320 = vrot.lane.b32.xlu0 %v315, 125
        %v321 = vpop.permute.xlu0 %320
        %vm324 = vcmask 1048552
        %325 = vst.msk [vmem:[#allocation2] sm:$0xff] %vm324, %v319
        %326 = vst.msk [vmem:[#allocation2 + $0x20] sm:$0xff] %vm324, %v321
        %v327 = vld [vmem:[%s301] sm:$0xff]
        %v328 = vld [vmem:[%s301 + $0x8] sm:$0xff]
        %331 = vrot.lane.b32.xlu0 %v327, 125
        %v332 = vpop.permute.xlu0 %331
        %333 = vrot.lane.b32.xlu0 %v328, 125
        %v334 = vpop.permute.xlu0 %333
        %vm337 = vcmask 23552
        %338 = vst.msk [vmem:[#allocation2 + $0x18] sm:$0xff] %vm337, %v332
        %339 = vst.msk [vmem:[#allocation2 + $0x38] sm:$0xff] %vm337, %v334
        %v340 = vld [vmem:[#allocation2] sm:$0xff]
        %v341 = vld [vmem:[#allocation2 + $0x8] sm:$0xff]
        %v342 = vld [vmem:[#allocation2 + $0x10] sm:$0xff]
        %v343 = vld [vmem:[#allocation2 + $0x18] sm:$0xff]
        %v344 = vld [vmem:[#allocation2 + $0x20] sm:$0xff]
        %v345 = vld [vmem:[#allocation2 + $0x28] sm:$0xff]
        %v346 = vld [vmem:[#allocation2 + $0x30] sm:$0xff]
        %v347 = vld [vmem:[#allocation2 + $0x38] sm:$0xff]
        %349 = vset.pattern.permute.xlu0 0
        %350 = vperm.xlu0 %349, %v304
        %v351 = vpop.permute.xlu0 %350
        %354 = vset.pattern.permute.xlu0 0
        %355 = vperm.xlu0 %354, %v305
        %v356 = vpop.permute.xlu0 %355
        %v358 = vmul.f32 %v351, %v340
        %v359 = vmul.f32 %v351, %v341
        %v360 = vmul.f32 %v351, %v342
        %v361 = vmul.f32 %v351, %v343
        %v362 = vmul.f32 %v356, %v344
        %v363 = vmul.f32 %v356, %v345
        %v364 = vmul.f32 %v356, %v346
        %v365 = vmul.f32 %v356, %v347
        %v366 = vand.u32 2147483647, %v358
        %vm367 = vcmp.le.f32.partialorder %v366, 0.7853982
        %vm368 = vcmp.lt.s32.totalorder %v358, 0
        %v369 = vand.u32 %v358, 2139095040
        %v370 = vshrl.u32 %v369, 23
        %v371 = vsub.s32 %v370, 127
        %v372 = vand.u32 2147483647, %v358
        %v373 = vand.u32 %v372, 8388607
        %v374 = vor.u32 %v373, 8388608
        %v375 = vsub.s32 0, %v374
        %v376 = vadd.s32 %v371, 1
        %vm377 = vcmp.gt.s32.totalorder %v376, 0
        %v378 = vsel %vm377, %v376, 0
        %v379 = vshrl.u32 %v378, 5
        %v380 = vand.u32 %v378, 31
        %v381 = vsub.s32 32, %v380
        %v382 = vshrl.u32 683565275, %v381
        %v383 = vshll.u32 683565275, %v380
        %v384 = vshrl.u32 2475754826, %v381
        %v385 = vor.u32 %v383, %v384
        %v386 = vshll.u32 2475754826, %v380
        %v387 = vshrl.u32 2131351028, %v381
        %v388 = vor.u32 %v386, %v387
        %v389 = vshll.u32 2131351028, %v380
        %v390 = vshrl.u32 2102212464, %v381
        %v391 = vor.u32 %v389, %v390
        %v392 = vshll.u32 2102212464, %v380
        %v393 = vshrl.u32 920167782, %v381
        %v394 = vor.u32 %v392, %v393
        %v395 = vshll.u32 920167782, %v380
        %v396 = vshrl.u32 1326507024, %v381
        %v397 = vor.u32 %v395, %v396
        %vm398 = vcmp.lt.s32.totalorder %v379, 1
        %vm399 = vcmp.lt.s32.totalorder %v379, 2
        %vm400 = vcmp.lt.s32.totalorder %v379, 3
        %vm401 = vcmp.lt.s32.totalorder %v379, 4
        %v402 = vsel %vm398, %v382, %v385
        %v403 = vsel %vm401, %v391, 2102212464
        %v404 = vsel %vm400, %v388, %v403
        %v405 = vsel %vm399, %v402, %v404
        %v406 = vsel %vm398, %v385, %v388
        %v407 = vsel %vm401, %v394, 920167782
        %v408 = vsel %vm400, %v391, %v407
        %v409 = vsel %vm399, %v406, %v408
        %v410 = vsel %vm398, %v388, %v391
        %v411 = vsel %vm401, %v397, 1326507024
        %v412 = vsel %vm400, %v394, %v411
        %v413 = vsel %vm399, %v410, %v412
        %v414 = vshll.u32 %v374, 8
        %v415 = vmul.u32.u64.compose %v414, %v413
        %v416 = vextract.low.u32 %v415
        %v417 = vextract.high.u32 %v415
        %v418 = vmul.u32.u64.compose %v414, %v409
        %v419 = vextract.low.u32 %v418
        %v420 = vextract.high.u32 %v418
        %v421 = vmul.u32 %v414, %v405
        %v422 = vadd.s32 %v417, %v419
        %vm423 = vc.u32 %v417, %v419
        %v424 = vadd.s32 %v420, 1
        %v425 = vsel %vm423, %v424, %v420
        %v426 = vadd.s32 %v421, %v425
        %v427 = vadd.s32 %v426, 536870912
        %v428 = vshrl.u32 %v427, 30
        %v429 = vshll.u32 %v428, 30
        %v430 = vsub.s32 %v426, %v429
        %vm431 = vcmp.lt.s32.totalorder %v430, 0
        %v432 = vsub.s32 0, %v430
        %v433 = vsel %vm431, %v432, %v430
        %v434 = vclz %v433
        %v435 = vsub.s32 %v434, 2
        %vm436 = vcmp.gt.s32.totalorder 0, %v435
        %v437 = vsel %vm436, 0, %v435
        %v438 = vsub.s32 32, %v437
        %v439 = vshll.u32 %v430, %v437
        %v440 = vshrl.u32 %v422, %v438
        %v441 = vor.u32 %v439, %v440
        %v442 = vsub.s32 4294967266, %v437
        %v443 = vadd.s32 %v442, 127
        %v444 = vshll.u32 %v443, 23
        %v445 = vor.u32 4788187, %v444
        %v446 = vand.u32 2147483647, %v445
        %v448 = vcvt.s32.f32 %v441
        %v449 = vmul.f32 %v448, %v446
        %v450 = vxor.u32 %v449, 2147483648
        %v451 = vsel %vm368, %v450, %v449
        %v452 = vsub.s32 4, %v428
        %v453 = vsel %vm368, %v452, %v428
        %v454 = vsel %vm367, %v358, %v451
        %v455 = vsel %vm367, 0, %v453
        %v456 = vcosq.f32.pop %v454
        %v457 = vsinq.f32.pop %v454
        %vm458 = vweird.f32 %v358
        %v459 = vadd.s32 %v455, 3
        %v460 = vand.u32 %v459, 3
        %vm461 = vcmp.lt.s32.totalorder %v460, 2
        %vm462 = vcmp.eq.s32.totalorder %v460, 0
        %v463 = vxor.u32 %v457, 2147483648
        %v464 = vsel %vm462, %v456, %v463
        %vm465 = vcmp.eq.s32.totalorder %v460, 2
        %v466 = vxor.u32 %v456, 2147483648
        %v467 = vsel %vm465, %v466, %v457
        %v468 = vsel %vm461, %v464, %v467
        %v469 = vsel %vm458, nan, %v468
        %v470 = vand.u32 2147483647, %v359
        %vm471 = vcmp.le.f32.partialorder %v470, 0.7853982
        %vm472 = vcmp.lt.s32.totalorder %v359, 0
        %v473 = vand.u32 %v359, 2139095040
        %v474 = vshrl.u32 %v473, 23
        %v475 = vsub.s32 %v474, 127
        %v476 = vand.u32 2147483647, %v359
        %v477 = vand.u32 %v476, 8388607
        %v478 = vor.u32 %v477, 8388608
        %v479 = vsub.s32 0, %v478
        %v480 = vadd.s32 %v475, 1
        %vm481 = vcmp.gt.s32.totalorder %v480, 0
        %v482 = vsel %vm481, %v480, 0
        %v483 = vshrl.u32 %v482, 5
        %v484 = vand.u32 %v482, 31
        %v485 = vsub.s32 32, %v484
        %v486 = vshrl.u32 683565275, %v485
        %v487 = vshll.u32 683565275, %v484
        %v488 = vshrl.u32 2475754826, %v485
        %v489 = vor.u32 %v487, %v488
        %v490 = vshll.u32 2475754826, %v484
        %v491 = vshrl.u32 2131351028, %v485
        %v492 = vor.u32 %v490, %v491
        %v493 = vshll.u32 2131351028, %v484
        %v494 = vshrl.u32 2102212464, %v485
        %v495 = vor.u32 %v493, %v494
        %v496 = vshll.u32 2102212464, %v484
        %v497 = vshrl.u32 920167782, %v485
        %v498 = vor.u32 %v496, %v497
        %v499 = vshll.u32 920167782, %v484
        %v500 = vshrl.u32 1326507024, %v485
        %v501 = vor.u32 %v499, %v500
        %vm502 = vcmp.lt.s32.totalorder %v483, 1
        %vm503 = vcmp.lt.s32.totalorder %v483, 2
        %vm504 = vcmp.lt.s32.totalorder %v483, 3
        %vm505 = vcmp.lt.s32.totalorder %v483, 4
        %v506 = vsel %vm502, %v486, %v489
        %v507 = vsel %vm505, %v495, 2102212464
        %v508 = vsel %vm504, %v492, %v507
        %v509 = vsel %vm503, %v506, %v508
        %v510 = vsel %vm502, %v489, %v492
        %v511 = vsel %vm505, %v498, 920167782
        %v512 = vsel %vm504, %v495, %v511
        %v513 = vsel %vm503, %v510, %v512
        %v514 = vsel %vm502, %v492, %v495
        %v515 = vsel %vm505, %v501, 1326507024
        %v516 = vsel %vm504, %v498, %v515
        %v517 = vsel %vm503, %v514, %v516
        %v518 = vshll.u32 %v478, 8
        %v519 = vmul.u32.u64.compose %v518, %v517
        %v520 = vextract.low.u32 %v519
        %v521 = vextract.high.u32 %v519
        %v522 = vmul.u32.u64.compose %v518, %v513
        %v523 = vextract.low.u32 %v522
        %v524 = vextract.high.u32 %v522
        %v525 = vmul.u32 %v518, %v509
        %v526 = vadd.s32 %v521, %v523
        %vm527 = vc.u32 %v521, %v523
        %v528 = vadd.s32 %v524, 1
        %v529 = vsel %vm527, %v528, %v524
        %v530 = vadd.s32 %v525, %v529
        %v531 = vadd.s32 %v530, 536870912
        %v532 = vshrl.u32 %v531, 30
        %v533 = vshll.u32 %v532, 30
        %v534 = vsub.s32 %v530, %v533
        %vm535 = vcmp.lt.s32.totalorder %v534, 0
        %v536 = vsub.s32 0, %v534
        %v537 = vsel %vm535, %v536, %v534
        %v538 = vclz %v537
        %v539 = vsub.s32 %v538, 2
        %vm540 = vcmp.gt.s32.totalorder 0, %v539
        %v541 = vsel %vm540, 0, %v539
        %v542 = vsub.s32 32, %v541
        %v543 = vshll.u32 %v534, %v541
        %v544 = vshrl.u32 %v526, %v542
        %v545 = vor.u32 %v543, %v544
        %v546 = vsub.s32 4294967266, %v541
        %v547 = vadd.s32 %v546, 127
        %v548 = vshll.u32 %v547, 23
        %v549 = vor.u32 4788187, %v548
        %v550 = vand.u32 2147483647, %v549
        %v552 = vcvt.s32.f32 %v545
        %v553 = vmul.f32 %v552, %v550
        %v554 = vxor.u32 %v553, 2147483648
        %v555 = vsel %vm472, %v554, %v553
        %v556 = vsub.s32 4, %v532
        %v557 = vsel %vm472, %v556, %v532
        %v558 = vsel %vm471, %v359, %v555
        %v559 = vsel %vm471, 0, %v557
        %v560 = vcosq.f32.pop %v558
        %v561 = vsinq.f32.pop %v558
        %vm562 = vweird.f32 %v359
        %v563 = vadd.s32 %v559, 3
        %v564 = vand.u32 %v563, 3
        %vm565 = vcmp.lt.s32.totalorder %v564, 2
        %vm566 = vcmp.eq.s32.totalorder %v564, 0
        %v567 = vxor.u32 %v561, 2147483648
        %v568 = vsel %vm566, %v560, %v567
        %vm569 = vcmp.eq.s32.totalorder %v564, 2
        %v570 = vxor.u32 %v560, 2147483648
        %v571 = vsel %vm569, %v570, %v561
        %v572 = vsel %vm565, %v568, %v571
        %v573 = vsel %vm562, nan, %v572
        %v574 = vand.u32 2147483647, %v360
        %vm575 = vcmp.le.f32.partialorder %v574, 0.7853982
        %vm576 = vcmp.lt.s32.totalorder %v360, 0
        %v577 = vand.u32 %v360, 2139095040
        %v578 = vshrl.u32 %v577, 23
        %v579 = vsub.s32 %v578, 127
        %v580 = vand.u32 2147483647, %v360
        %v581 = vand.u32 %v580, 8388607
        %v582 = vor.u32 %v581, 8388608
        %v583 = vsub.s32 0, %v582
        %v584 = vadd.s32 %v579, 1
        %vm585 = vcmp.gt.s32.totalorder %v584, 0
        %v586 = vsel %vm585, %v584, 0
        %v587 = vshrl.u32 %v586, 5
        %v588 = vand.u32 %v586, 31
        %v589 = vsub.s32 32, %v588
        %v590 = vshrl.u32 683565275, %v589
        %v591 = vshll.u32 683565275, %v588
        %v592 = vshrl.u32 2475754826, %v589
        %v593 = vor.u32 %v591, %v592
        %v594 = vshll.u32 2475754826, %v588
        %v595 = vshrl.u32 2131351028, %v589
        %v596 = vor.u32 %v594, %v595
        %v597 = vshll.u32 2131351028, %v588
        %v598 = vshrl.u32 2102212464, %v589
        %v599 = vor.u32 %v597, %v598
        %v600 = vshll.u32 2102212464, %v588
        %v601 = vshrl.u32 920167782, %v589
        %v602 = vor.u32 %v600, %v601
        %v603 = vshll.u32 920167782, %v588
        %v604 = vshrl.u32 1326507024, %v589
        %v605 = vor.u32 %v603, %v604
        %vm606 = vcmp.lt.s32.totalorder %v587, 1
        %vm607 = vcmp.lt.s32.totalorder %v587, 2
        %vm608 = vcmp.lt.s32.totalorder %v587, 3
        %vm609 = vcmp.lt.s32.totalorder %v587, 4
        %v610 = vsel %vm606, %v590, %v593
        %v611 = vsel %vm609, %v599, 2102212464
        %v612 = vsel %vm608, %v596, %v611
        %v613 = vsel %vm607, %v610, %v612
        %v614 = vsel %vm606, %v593, %v596
        %v615 = vsel %vm609, %v602, 920167782
        %v616 = vsel %vm608, %v599, %v615
        %v617 = vsel %vm607, %v614, %v616
        %v618 = vsel %vm606, %v596, %v599
        %v619 = vsel %vm609, %v605, 1326507024
        %v620 = vsel %vm608, %v602, %v619
        %v621 = vsel %vm607, %v618, %v620
        %v622 = vshll.u32 %v582, 8
        %v623 = vmul.u32.u64.compose %v622, %v621
        %v624 = vextract.low.u32 %v623
        %v625 = vextract.high.u32 %v623
        %v626 = vmul.u32.u64.compose %v622, %v617
        %v627 = vextract.low.u32 %v626
        %v628 = vextract.high.u32 %v626
        %v629 = vmul.u32 %v622, %v613
        %v630 = vadd.s32 %v625, %v627
        %vm631 = vc.u32 %v625, %v627
        %v632 = vadd.s32 %v628, 1
        %v633 = vsel %vm631, %v632, %v628
        %v634 = vadd.s32 %v629, %v633
        %v635 = vadd.s32 %v634, 536870912
        %v636 = vshrl.u32 %v635, 30
        %v637 = vshll.u32 %v636, 30
        %v638 = vsub.s32 %v634, %v637
        %vm639 = vcmp.lt.s32.totalorder %v638, 0
        %v640 = vsub.s32 0, %v638
        %v641 = vsel %vm639, %v640, %v638
        %v642 = vclz %v641
        %v643 = vsub.s32 %v642, 2
        %vm644 = vcmp.gt.s32.totalorder 0, %v643
        %v645 = vsel %vm644, 0, %v643
        %v646 = vsub.s32 32, %v645
        %v647 = vshll.u32 %v638, %v645
        %v648 = vshrl.u32 %v630, %v646
        %v649 = vor.u32 %v647, %v648
        %v650 = vsub.s32 4294967266, %v645
        %v651 = vadd.s32 %v650, 127
        %v652 = vshll.u32 %v651, 23
        %v653 = vor.u32 4788187, %v652
        %v654 = vand.u32 2147483647, %v653
        %v656 = vcvt.s32.f32 %v649
        %v657 = vmul.f32 %v656, %v654
        %v658 = vxor.u32 %v657, 2147483648
        %v659 = vsel %vm576, %v658, %v657
        %v660 = vsub.s32 4, %v636
        %v661 = vsel %vm576, %v660, %v636
        %v662 = vsel %vm575, %v360, %v659
        %v663 = vsel %vm575, 0, %v661
        %v664 = vcosq.f32.pop %v662
        %v665 = vsinq.f32.pop %v662
        %vm666 = vweird.f32 %v360
        %v667 = vadd.s32 %v663, 3
        %v668 = vand.u32 %v667, 3
        %vm669 = vcmp.lt.s32.totalorder %v668, 2
        %vm670 = vcmp.eq.s32.totalorder %v668, 0
        %v671 = vxor.u32 %v665, 2147483648
        %v672 = vsel %vm670, %v664, %v671
        %vm673 = vcmp.eq.s32.totalorder %v668, 2
        %v674 = vxor.u32 %v664, 2147483648
        %v675 = vsel %vm673, %v674, %v665
        %v676 = vsel %vm669, %v672, %v675
        %v677 = vsel %vm666, nan, %v676
        %v678 = vand.u32 2147483647, %v361
        %vm679 = vcmp.le.f32.partialorder %v678, 0.7853982
        %vm680 = vcmp.lt.s32.totalorder %v361, 0
        %v681 = vand.u32 %v361, 2139095040
        %v682 = vshrl.u32 %v681, 23
        %v683 = vsub.s32 %v682, 127
        %v684 = vand.u32 2147483647, %v361
        %v685 = vand.u32 %v684, 8388607
        %v686 = vor.u32 %v685, 8388608
        %v687 = vsub.s32 0, %v686
        %v688 = vadd.s32 %v683, 1
        %vm689 = vcmp.gt.s32.totalorder %v688, 0
        %v690 = vsel %vm689, %v688, 0
        %v691 = vshrl.u32 %v690, 5
        %v692 = vand.u32 %v690, 31
        %v693 = vsub.s32 32, %v692
        %v694 = vshrl.u32 683565275, %v693
        %v695 = vshll.u32 683565275, %v692
        %v696 = vshrl.u32 2475754826, %v693
        %v697 = vor.u32 %v695, %v696
        %v698 = vshll.u32 2475754826, %v692
        %v699 = vshrl.u32 2131351028, %v693
        %v700 = vor.u32 %v698, %v699
        %v701 = vshll.u32 2131351028, %v692
        %v702 = vshrl.u32 2102212464, %v693
        %v703 = vor.u32 %v701, %v702
        %v704 = vshll.u32 2102212464, %v692
        %v705 = vshrl.u32 920167782, %v693
        %v706 = vor.u32 %v704, %v705
        %v707 = vshll.u32 920167782, %v692
        %v708 = vshrl.u32 1326507024, %v693
        %v709 = vor.u32 %v707, %v708
        %vm710 = vcmp.lt.s32.totalorder %v691, 1
        %vm711 = vcmp.lt.s32.totalorder %v691, 2
        %vm712 = vcmp.lt.s32.totalorder %v691, 3
        %vm713 = vcmp.lt.s32.totalorder %v691, 4
        %v714 = vsel %vm710, %v694, %v697
        %v715 = vsel %vm713, %v703, 2102212464
        %v716 = vsel %vm712, %v700, %v715
        %v717 = vsel %vm711, %v714, %v716
        %v718 = vsel %vm710, %v697, %v700
        %v719 = vsel %vm713, %v706, 920167782
        %v720 = vsel %vm712, %v703, %v719
        %v721 = vsel %vm711, %v718, %v720
        %v722 = vsel %vm710, %v700, %v703
        %v723 = vsel %vm713, %v709, 1326507024
        %v724 = vsel %vm712, %v706, %v723
        %v725 = vsel %vm711, %v722, %v724
        %v726 = vshll.u32 %v686, 8
        %v727 = vmul.u32.u64.compose %v726, %v725
        %v728 = vextract.low.u32 %v727
        %v729 = vextract.high.u32 %v727
        %v730 = vmul.u32.u64.compose %v726, %v721
        %v731 = vextract.low.u32 %v730
        %v732 = vextract.high.u32 %v730
        %v733 = vmul.u32 %v726, %v717
        %v734 = vadd.s32 %v729, %v731
        %vm735 = vc.u32 %v729, %v731
        %v736 = vadd.s32 %v732, 1
        %v737 = vsel %vm735, %v736, %v732
        %v738 = vadd.s32 %v733, %v737
        %v739 = vadd.s32 %v738, 536870912
        %v740 = vshrl.u32 %v739, 30
        %v741 = vshll.u32 %v740, 30
        %v742 = vsub.s32 %v738, %v741
        %vm743 = vcmp.lt.s32.totalorder %v742, 0
        %v744 = vsub.s32 0, %v742
        %v745 = vsel %vm743, %v744, %v742
        %v746 = vclz %v745
        %v747 = vsub.s32 %v746, 2
        %vm748 = vcmp.gt.s32.totalorder 0, %v747
        %v749 = vsel %vm748, 0, %v747
        %v750 = vsub.s32 32, %v749
        %v751 = vshll.u32 %v742, %v749
        %v752 = vshrl.u32 %v734, %v750
        %v753 = vor.u32 %v751, %v752
        %v754 = vsub.s32 4294967266, %v749
        %v755 = vadd.s32 %v754, 127
        %v756 = vshll.u32 %v755, 23
        %v757 = vor.u32 4788187, %v756
        %v758 = vand.u32 2147483647, %v757
        %v760 = vcvt.s32.f32 %v753
        %v761 = vmul.f32 %v760, %v758
        %v762 = vxor.u32 %v761, 2147483648
        %v763 = vsel %vm680, %v762, %v761
        %v764 = vsub.s32 4, %v740
        %v765 = vsel %vm680, %v764, %v740
        %v766 = vsel %vm679, %v361, %v763
        %v767 = vsel %vm679, 0, %v765
        %v768 = vcosq.f32.pop %v766
        %v769 = vsinq.f32.pop %v766
        %vm770 = vweird.f32 %v361
        %v771 = vadd.s32 %v767, 3
        %v772 = vand.u32 %v771, 3
        %vm773 = vcmp.lt.s32.totalorder %v772, 2
        %vm774 = vcmp.eq.s32.totalorder %v772, 0
        %v775 = vxor.u32 %v769, 2147483648
        %v776 = vsel %vm774, %v768, %v775
        %vm777 = vcmp.eq.s32.totalorder %v772, 2
        %v778 = vxor.u32 %v768, 2147483648
        %v779 = vsel %vm777, %v778, %v769
        %v780 = vsel %vm773, %v776, %v779
        %v781 = vsel %vm770, nan, %v780
        %v782 = vand.u32 2147483647, %v362
        %vm783 = vcmp.le.f32.partialorder %v782, 0.7853982
        %vm784 = vcmp.lt.s32.totalorder %v362, 0
        %v785 = vand.u32 %v362, 2139095040
        %v786 = vshrl.u32 %v785, 23
        %v787 = vsub.s32 %v786, 127
        %v788 = vand.u32 2147483647, %v362
        %v789 = vand.u32 %v788, 8388607
        %v790 = vor.u32 %v789, 8388608
        %v791 = vsub.s32 0, %v790
        %v792 = vadd.s32 %v787, 1
        %vm793 = vcmp.gt.s32.totalorder %v792, 0
        %v794 = vsel %vm793, %v792, 0
        %v795 = vshrl.u32 %v794, 5
        %v796 = vand.u32 %v794, 31
        %v797 = vsub.s32 32, %v796
        %v798 = vshrl.u32 683565275, %v797
        %v799 = vshll.u32 683565275, %v796
        %v800 = vshrl.u32 2475754826, %v797
        %v801 = vor.u32 %v799, %v800
        %v802 = vshll.u32 2475754826, %v796
        %v803 = vshrl.u32 2131351028, %v797
        %v804 = vor.u32 %v802, %v803
        %v805 = vshll.u32 2131351028, %v796
        %v806 = vshrl.u32 2102212464, %v797
        %v807 = vor.u32 %v805, %v806
        %v808 = vshll.u32 2102212464, %v796
        %v809 = vshrl.u32 920167782, %v797
        %v810 = vor.u32 %v808, %v809
        %v811 = vshll.u32 920167782, %v796
        %v812 = vshrl.u32 1326507024, %v797
        %v813 = vor.u32 %v811, %v812
        %vm814 = vcmp.lt.s32.totalorder %v795, 1
        %vm815 = vcmp.lt.s32.totalorder %v795, 2
        %vm816 = vcmp.lt.s32.totalorder %v795, 3
        %vm817 = vcmp.lt.s32.totalorder %v795, 4
        %v818 = vsel %vm814, %v798, %v801
        %v819 = vsel %vm817, %v807, 2102212464
        %v820 = vsel %vm816, %v804, %v819
        %v821 = vsel %vm815, %v818, %v820
        %v822 = vsel %vm814, %v801, %v804
        %v823 = vsel %vm817, %v810, 920167782
        %v824 = vsel %vm816, %v807, %v823
        %v825 = vsel %vm815, %v822, %v824
        %v826 = vsel %vm814, %v804, %v807
        %v827 = vsel %vm817, %v813, 1326507024
        %v828 = vsel %vm816, %v810, %v827
        %v829 = vsel %vm815, %v826, %v828
        %v830 = vshll.u32 %v790, 8
        %v831 = vmul.u32.u64.compose %v830, %v829
        %v832 = vextract.low.u32 %v831
        %v833 = vextract.high.u32 %v831
        %v834 = vmul.u32.u64.compose %v830, %v825
        %v835 = vextract.low.u32 %v834
        %v836 = vextract.high.u32 %v834
        %v837 = vmul.u32 %v830, %v821
        %v838 = vadd.s32 %v833, %v835
        %vm839 = vc.u32 %v833, %v835
        %v840 = vadd.s32 %v836, 1
        %v841 = vsel %vm839, %v840, %v836
        %v842 = vadd.s32 %v837, %v841
        %v843 = vadd.s32 %v842, 536870912
        %v844 = vshrl.u32 %v843, 30
        %v845 = vshll.u32 %v844, 30
        %v846 = vsub.s32 %v842, %v845
        %vm847 = vcmp.lt.s32.totalorder %v846, 0
        %v848 = vsub.s32 0, %v846
        %v849 = vsel %vm847, %v848, %v846
        %v850 = vclz %v849
        %v851 = vsub.s32 %v850, 2
        %vm852 = vcmp.gt.s32.totalorder 0, %v851
        %v853 = vsel %vm852, 0, %v851
        %v854 = vsub.s32 32, %v853
        %v855 = vshll.u32 %v846, %v853
        %v856 = vshrl.u32 %v838, %v854
        %v857 = vor.u32 %v855, %v856
        %v858 = vsub.s32 4294967266, %v853
        %v859 = vadd.s32 %v858, 127
        %v860 = vshll.u32 %v859, 23
        %v861 = vor.u32 4788187, %v860
        %v862 = vand.u32 2147483647, %v861
        %v864 = vcvt.s32.f32 %v857
        %v865 = vmul.f32 %v864, %v862
        %v866 = vxor.u32 %v865, 2147483648
        %v867 = vsel %vm784, %v866, %v865
        %v868 = vsub.s32 4, %v844
        %v869 = vsel %vm784, %v868, %v844
        %v870 = vsel %vm783, %v362, %v867
        %v871 = vsel %vm783, 0, %v869
        %v872 = vcosq.f32.pop %v870
        %v873 = vsinq.f32.pop %v870
        %vm874 = vweird.f32 %v362
        %v875 = vadd.s32 %v871, 3
        %v876 = vand.u32 %v875, 3
        %vm877 = vcmp.lt.s32.totalorder %v876, 2
        %vm878 = vcmp.eq.s32.totalorder %v876, 0
        %v879 = vxor.u32 %v873, 2147483648
        %v880 = vsel %vm878, %v872, %v879
        %vm881 = vcmp.eq.s32.totalorder %v876, 2
        %v882 = vxor.u32 %v872, 2147483648
        %v883 = vsel %vm881, %v882, %v873
        %v884 = vsel %vm877, %v880, %v883
        %v885 = vsel %vm874, nan, %v884
        %v886 = vand.u32 2147483647, %v363
        %vm887 = vcmp.le.f32.partialorder %v886, 0.7853982
        %vm888 = vcmp.lt.s32.totalorder %v363, 0
        %v889 = vand.u32 %v363, 2139095040
        %v890 = vshrl.u32 %v889, 23
        %v891 = vsub.s32 %v890, 127
        %v892 = vand.u32 2147483647, %v363
        %v893 = vand.u32 %v892, 8388607
        %v894 = vor.u32 %v893, 8388608
        %v895 = vsub.s32 0, %v894
        %v896 = vadd.s32 %v891, 1
        %vm897 = vcmp.gt.s32.totalorder %v896, 0
        %v898 = vsel %vm897, %v896, 0
        %v899 = vshrl.u32 %v898, 5
        %v900 = vand.u32 %v898, 31
        %v901 = vsub.s32 32, %v900
        %v902 = vshrl.u32 683565275, %v901
        %v903 = vshll.u32 683565275, %v900
        %v904 = vshrl.u32 2475754826, %v901
        %v905 = vor.u32 %v903, %v904
        %v906 = vshll.u32 2475754826, %v900
        %v907 = vshrl.u32 2131351028, %v901
        %v908 = vor.u32 %v906, %v907
        %v909 = vshll.u32 2131351028, %v900
        %v910 = vshrl.u32 2102212464, %v901
        %v911 = vor.u32 %v909, %v910
        %v912 = vshll.u32 2102212464, %v900
        %v913 = vshrl.u32 920167782, %v901
        %v914 = vor.u32 %v912, %v913
        %v915 = vshll.u32 920167782, %v900
        %v916 = vshrl.u32 1326507024, %v901
        %v917 = vor.u32 %v915, %v916
        %vm918 = vcmp.lt.s32.totalorder %v899, 1
        %vm919 = vcmp.lt.s32.totalorder %v899, 2
        %vm920 = vcmp.lt.s32.totalorder %v899, 3
        %vm921 = vcmp.lt.s32.totalorder %v899, 4
        %v922 = vsel %vm918, %v902, %v905
        %v923 = vsel %vm921, %v911, 2102212464
        %v924 = vsel %vm920, %v908, %v923
        %v925 = vsel %vm919, %v922, %v924
        %v926 = vsel %vm918, %v905, %v908
        %v927 = vsel %vm921, %v914, 920167782
        %v928 = vsel %vm920, %v911, %v927
        %v929 = vsel %vm919, %v926, %v928
        %v930 = vsel %vm918, %v908, %v911
        %v931 = vsel %vm921, %v917, 1326507024
        %v932 = vsel %vm920, %v914, %v931
        %v933 = vsel %vm919, %v930, %v932
        %v934 = vshll.u32 %v894, 8
        %v935 = vmul.u32.u64.compose %v934, %v933
        %v936 = vextract.low.u32 %v935
        %v937 = vextract.high.u32 %v935
        %v938 = vmul.u32.u64.compose %v934, %v929
        %v939 = vextract.low.u32 %v938
        %v940 = vextract.high.u32 %v938
        %v941 = vmul.u32 %v934, %v925
        %v942 = vadd.s32 %v937, %v939
        %vm943 = vc.u32 %v937, %v939
        %v944 = vadd.s32 %v940, 1
        %v945 = vsel %vm943, %v944, %v940
        %v946 = vadd.s32 %v941, %v945
        %v947 = vadd.s32 %v946, 536870912
        %v948 = vshrl.u32 %v947, 30
        %v949 = vshll.u32 %v948, 30
        %v950 = vsub.s32 %v946, %v949
        %vm951 = vcmp.lt.s32.totalorder %v950, 0
        %v952 = vsub.s32 0, %v950
        %v953 = vsel %vm951, %v952, %v950
        %v954 = vclz %v953
        %v955 = vsub.s32 %v954, 2
        %vm956 = vcmp.gt.s32.totalorder 0, %v955
        %v957 = vsel %vm956, 0, %v955
        %v958 = vsub.s32 32, %v957
        %v959 = vshll.u32 %v950, %v957
        %v960 = vshrl.u32 %v942, %v958
        %v961 = vor.u32 %v959, %v960
        %v962 = vsub.s32 4294967266, %v957
        %v963 = vadd.s32 %v962, 127
        %v964 = vshll.u32 %v963, 23
        %v965 = vor.u32 4788187, %v964
        %v966 = vand.u32 2147483647, %v965
        %v968 = vcvt.s32.f32 %v961
        %v969 = vmul.f32 %v968, %v966
        %v970 = vxor.u32 %v969, 2147483648
        %v971 = vsel %vm888, %v970, %v969
        %v972 = vsub.s32 4, %v948
        %v973 = vsel %vm888, %v972, %v948
        %v974 = vsel %vm887, %v363, %v971
        %v975 = vsel %vm887, 0, %v973
        %v976 = vcosq.f32.pop %v974
        %v977 = vsinq.f32.pop %v974
        %vm978 = vweird.f32 %v363
        %v979 = vadd.s32 %v975, 3
        %v980 = vand.u32 %v979, 3
        %vm981 = vcmp.lt.s32.totalorder %v980, 2
        %vm982 = vcmp.eq.s32.totalorder %v980, 0
        %v983 = vxor.u32 %v977, 2147483648
        %v984 = vsel %vm982, %v976, %v983
        %vm985 = vcmp.eq.s32.totalorder %v980, 2
        %v986 = vxor.u32 %v976, 2147483648
        %v987 = vsel %vm985, %v986, %v977
        %v988 = vsel %vm981, %v984, %v987
        %v989 = vsel %vm978, nan, %v988
        %v990 = vand.u32 2147483647, %v364
        %vm991 = vcmp.le.f32.partialorder %v990, 0.7853982
        %vm992 = vcmp.lt.s32.totalorder %v364, 0
        %v993 = vand.u32 %v364, 2139095040
        %v994 = vshrl.u32 %v993, 23
        %v995 = vsub.s32 %v994, 127
        %v996 = vand.u32 2147483647, %v364
        %v997 = vand.u32 %v996, 8388607
        %v998 = vor.u32 %v997, 8388608
        %v999 = vsub.s32 0, %v998
        %v1000 = vadd.s32 %v995, 1
        %vm1001 = vcmp.gt.s32.totalorder %v1000, 0
        %v1002 = vsel %vm1001, %v1000, 0
        %v1003 = vshrl.u32 %v1002, 5
        %v1004 = vand.u32 %v1002, 31
        %v1005 = vsub.s32 32, %v1004
        %v1006 = vshrl.u32 683565275, %v1005
        %v1007 = vshll.u32 683565275, %v1004
        %v1008 = vshrl.u32 2475754826, %v1005
        %v1009 = vor.u32 %v1007, %v1008
        %v1010 = vshll.u32 2475754826, %v1004
        %v1011 = vshrl.u32 2131351028, %v1005
        %v1012 = vor.u32 %v1010, %v1011
        %v1013 = vshll.u32 2131351028, %v1004
        %v1014 = vshrl.u32 2102212464, %v1005
        %v1015 = vor.u32 %v1013, %v1014
        %v1016 = vshll.u32 2102212464, %v1004
        %v1017 = vshrl.u32 920167782, %v1005
        %v1018 = vor.u32 %v1016, %v1017
        %v1019 = vshll.u32 920167782, %v1004
        %v1020 = vshrl.u32 1326507024, %v1005
        %v1021 = vor.u32 %v1019, %v1020
        %vm1022 = vcmp.lt.s32.totalorder %v1003, 1
        %vm1023 = vcmp.lt.s32.totalorder %v1003, 2
        %vm1024 = vcmp.lt.s32.totalorder %v1003, 3
        %vm1025 = vcmp.lt.s32.totalorder %v1003, 4
        %v1026 = vsel %vm1022, %v1006, %v1009
        %v1027 = vsel %vm1025, %v1015, 2102212464
        %v1028 = vsel %vm1024, %v1012, %v1027
        %v1029 = vsel %vm1023, %v1026, %v1028
        %v1030 = vsel %vm1022, %v1009, %v1012
        %v1031 = vsel %vm1025, %v1018, 920167782
        %v1032 = vsel %vm1024, %v1015, %v1031
        %v1033 = vsel %vm1023, %v1030, %v1032
        %v1034 = vsel %vm1022, %v1012, %v1015
        %v1035 = vsel %vm1025, %v1021, 1326507024
        %v1036 = vsel %vm1024, %v1018, %v1035
        %v1037 = vsel %vm1023, %v1034, %v1036
        %v1038 = vshll.u32 %v998, 8
        %v1039 = vmul.u32.u64.compose %v1038, %v1037
        %v1040 = vextract.low.u32 %v1039
        %v1041 = vextract.high.u32 %v1039
        %v1042 = vmul.u32.u64.compose %v1038, %v1033
        %v1043 = vextract.low.u32 %v1042
        %v1044 = vextract.high.u32 %v1042
        %v1045 = vmul.u32 %v1038, %v1029
        %v1046 = vadd.s32 %v1041, %v1043
        %vm1047 = vc.u32 %v1041, %v1043
        %v1048 = vadd.s32 %v1044, 1
        %v1049 = vsel %vm1047, %v1048, %v1044
        %v1050 = vadd.s32 %v1045, %v1049
        %v1051 = vadd.s32 %v1050, 536870912
        %v1052 = vshrl.u32 %v1051, 30
        %v1053 = vshll.u32 %v1052, 30
        %v1054 = vsub.s32 %v1050, %v1053
        %vm1055 = vcmp.lt.s32.totalorder %v1054, 0
        %v1056 = vsub.s32 0, %v1054
        %v1057 = vsel %vm1055, %v1056, %v1054
        %v1058 = vclz %v1057
        %v1059 = vsub.s32 %v1058, 2
        %vm1060 = vcmp.gt.s32.totalorder 0, %v1059
        %v1061 = vsel %vm1060, 0, %v1059
        %v1062 = vsub.s32 32, %v1061
        %v1063 = vshll.u32 %v1054, %v1061
        %v1064 = vshrl.u32 %v1046, %v1062
        %v1065 = vor.u32 %v1063, %v1064
        %v1066 = vsub.s32 4294967266, %v1061
        %v1067 = vadd.s32 %v1066, 127
        %v1068 = vshll.u32 %v1067, 23
        %v1069 = vor.u32 4788187, %v1068
        %v1070 = vand.u32 2147483647, %v1069
        %v1072 = vcvt.s32.f32 %v1065
        %v1073 = vmul.f32 %v1072, %v1070
        %v1074 = vxor.u32 %v1073, 2147483648
        %v1075 = vsel %vm992, %v1074, %v1073
        %v1076 = vsub.s32 4, %v1052
        %v1077 = vsel %vm992, %v1076, %v1052
        %v1078 = vsel %vm991, %v364, %v1075
        %v1079 = vsel %vm991, 0, %v1077
        %v1080 = vcosq.f32.pop %v1078
        %v1081 = vsinq.f32.pop %v1078
        %vm1082 = vweird.f32 %v364
        %v1083 = vadd.s32 %v1079, 3
        %v1084 = vand.u32 %v1083, 3
        %vm1085 = vcmp.lt.s32.totalorder %v1084, 2
        %vm1086 = vcmp.eq.s32.totalorder %v1084, 0
        %v1087 = vxor.u32 %v1081, 2147483648
        %v1088 = vsel %vm1086, %v1080, %v1087
        %vm1089 = vcmp.eq.s32.totalorder %v1084, 2
        %v1090 = vxor.u32 %v1080, 2147483648
        %v1091 = vsel %vm1089, %v1090, %v1081
        %v1092 = vsel %vm1085, %v1088, %v1091
        %v1093 = vsel %vm1082, nan, %v1092
        %v1094 = vand.u32 2147483647, %v365
        %vm1095 = vcmp.le.f32.partialorder %v1094, 0.7853982
        %vm1096 = vcmp.lt.s32.totalorder %v365, 0
        %v1097 = vand.u32 %v365, 2139095040
        %v1098 = vshrl.u32 %v1097, 23
        %v1099 = vsub.s32 %v1098, 127
        %v1100 = vand.u32 2147483647, %v365
        %v1101 = vand.u32 %v1100, 8388607
        %v1102 = vor.u32 %v1101, 8388608
        %v1103 = vsub.s32 0, %v1102
        %v1104 = vadd.s32 %v1099, 1
        %vm1105 = vcmp.gt.s32.totalorder %v1104, 0
        %v1106 = vsel %vm1105, %v1104, 0
        %v1107 = vshrl.u32 %v1106, 5
        %v1108 = vand.u32 %v1106, 31
        %v1109 = vsub.s32 32, %v1108
        %v1110 = vshrl.u32 683565275, %v1109
        %v1111 = vshll.u32 683565275, %v1108
        %v1112 = vshrl.u32 2475754826, %v1109
        %v1113 = vor.u32 %v1111, %v1112
        %v1114 = vshll.u32 2475754826, %v1108
        %v1115 = vshrl.u32 2131351028, %v1109
        %v1116 = vor.u32 %v1114, %v1115
        %v1117 = vshll.u32 2131351028, %v1108
        %v1118 = vshrl.u32 2102212464, %v1109
        %v1119 = vor.u32 %v1117, %v1118
        %v1120 = vshll.u32 2102212464, %v1108
        %v1121 = vshrl.u32 920167782, %v1109
        %v1122 = vor.u32 %v1120, %v1121
        %v1123 = vshll.u32 920167782, %v1108
        %v1124 = vshrl.u32 1326507024, %v1109
        %v1125 = vor.u32 %v1123, %v1124
        %vm1126 = vcmp.lt.s32.totalorder %v1107, 1
        %vm1127 = vcmp.lt.s32.totalorder %v1107, 2
        %vm1128 = vcmp.lt.s32.totalorder %v1107, 3
        %vm1129 = vcmp.lt.s32.totalorder %v1107, 4
        %v1130 = vsel %vm1126, %v1110, %v1113
        %v1131 = vsel %vm1129, %v1119, 2102212464
        %v1132 = vsel %vm1128, %v1116, %v1131
        %v1133 = vsel %vm1127, %v1130, %v1132
        %v1134 = vsel %vm1126, %v1113, %v1116
        %v1135 = vsel %vm1129, %v1122, 920167782
        %v1136 = vsel %vm1128, %v1119, %v1135
        %v1137 = vsel %vm1127, %v1134, %v1136
        %v1138 = vsel %vm1126, %v1116, %v1119
        %v1139 = vsel %vm1129, %v1125, 1326507024
        %v1140 = vsel %vm1128, %v1122, %v1139
        %v1141 = vsel %vm1127, %v1138, %v1140
        %v1142 = vshll.u32 %v1102, 8
        %v1143 = vmul.u32.u64.compose %v1142, %v1141
        %v1144 = vextract.low.u32 %v1143
        %v1145 = vextract.high.u32 %v1143
        %v1146 = vmul.u32.u64.compose %v1142, %v1137
        %v1147 = vextract.low.u32 %v1146
        %v1148 = vextract.high.u32 %v1146
        %v1149 = vmul.u32 %v1142, %v1133
        %v1150 = vadd.s32 %v1145, %v1147
        %vm1151 = vc.u32 %v1145, %v1147
        %v1152 = vadd.s32 %v1148, 1
        %v1153 = vsel %vm1151, %v1152, %v1148
        %v1154 = vadd.s32 %v1149, %v1153
        %v1155 = vadd.s32 %v1154, 536870912
        %v1156 = vshrl.u32 %v1155, 30
        %v1157 = vshll.u32 %v1156, 30
        %v1158 = vsub.s32 %v1154, %v1157
        %vm1159 = vcmp.lt.s32.totalorder %v1158, 0
        %v1160 = vsub.s32 0, %v1158
        %v1161 = vsel %vm1159, %v1160, %v1158
        %v1162 = vclz %v1161
        %v1163 = vsub.s32 %v1162, 2
        %vm1164 = vcmp.gt.s32.totalorder 0, %v1163
        %v1165 = vsel %vm1164, 0, %v1163
        %v1166 = vsub.s32 32, %v1165
        %v1167 = vshll.u32 %v1158, %v1165
        %v1168 = vshrl.u32 %v1150, %v1166
        %v1169 = vor.u32 %v1167, %v1168
        %v1170 = vsub.s32 4294967266, %v1165
        %v1171 = vadd.s32 %v1170, 127
        %v1172 = vshll.u32 %v1171, 23
        %v1173 = vor.u32 4788187, %v1172
        %v1174 = vand.u32 2147483647, %v1173
        %v1176 = vcvt.s32.f32 %v1169
        %v1177 = vmul.f32 %v1176, %v1174
        %v1178 = vxor.u32 %v1177, 2147483648
        %v1179 = vsel %vm1096, %v1178, %v1177
        %v1180 = vsub.s32 4, %v1156
        %v1181 = vsel %vm1096, %v1180, %v1156
        %v1182 = vsel %vm1095, %v365, %v1179
        %v1183 = vsel %vm1095, 0, %v1181
        %v1184 = vcosq.f32.pop %v1182
        %v1185 = vsinq.f32.pop %v1182
        %vm1186 = vweird.f32 %v365
        %v1187 = vadd.s32 %v1183, 3
        %v1188 = vand.u32 %v1187, 3
        %vm1189 = vcmp.lt.s32.totalorder %v1188, 2
        %vm1190 = vcmp.eq.s32.totalorder %v1188, 0
        %v1191 = vxor.u32 %v1185, 2147483648
        %v1192 = vsel %vm1190, %v1184, %v1191
        %vm1193 = vcmp.eq.s32.totalorder %v1188, 2
        %v1194 = vxor.u32 %v1184, 2147483648
        %v1195 = vsel %vm1193, %v1194, %v1185
        %v1196 = vsel %vm1189, %v1192, %v1195
        %v1197 = vsel %vm1186, nan, %v1196
        %v1198 = vmul.f32 %v469, %v469
        %v1199 = vmul.f32 %v573, %v573
        %v1200 = vmul.f32 %v677, %v677
        %v1201 = vmul.f32 %v781, %v781
        %v1202 = vmul.f32 %v885, %v885
        %v1203 = vmul.f32 %v989, %v989
        %v1204 = vmul.f32 %v1093, %v1093
        %v1205 = vmul.f32 %v1197, %v1197
        %1206 = vset.pattern.permute.xlu0 1
        %1207 = vperm.xlu0 %1206, %v304
        %v1208 = vpop.permute.xlu0 %1207
        %1210 = vset.pattern.permute.xlu0 1
        %1211 = vperm.xlu0 %1210, %v305
        %v1212 = vpop.permute.xlu0 %1211
        %v1214 = vmul.f32 %v1208, %v1198
        %v1215 = vmul.f32 %v1208, %v1199
        %v1216 = vmul.f32 %v1208, %v1200
        %v1217 = vmul.f32 %v1208, %v1201
        %v1218 = vmul.f32 %v1212, %v1202
        %v1219 = vmul.f32 %v1212, %v1203
        %v1220 = vmul.f32 %v1212, %v1204
        %v1221 = vmul.f32 %v1212, %v1205
        %v1222 = vadd.f32 %v340, %v1214
        %v1223 = vadd.f32 %v341, %v1215
        %v1224 = vadd.f32 %v342, %v1216
        %v1225 = vadd.f32 %v343, %v1217
        %v1226 = vadd.f32 %v344, %v1218
        %v1227 = vadd.f32 %v345, %v1219
        %v1228 = vadd.f32 %v346, %v1220
        %v1229 = vadd.f32 %v347, %v1221
        %v1230 = vpack.c.bf16 %v1226, %v1222
        %v1231 = vpack.c.bf16 %v1227, %v1223
        %v1232 = vpack.c.bf16 %v1228, %v1224
        %v1233 = vpack.c.bf16 %v1229, %v1225
        %1237 = vrot.lane.b32.xlu0 %v1230, 127
        %v1238 = vpop.permute.xlu0 %1237
        %1239 = vrot.lane.b32.xlu0 %v1231, 127
        %v1240 = vpop.permute.xlu0 %1239
        %1241 = vrot.lane.b32.xlu0 %v1232, 127
        %v1242 = vpop.permute.xlu0 %1241
        %vm1243 = vcmask 1039360
        %v1244 = vsel %vm1243, %v1238, %v1240
        %v1245 = vsel %vm1243, %v1240, %v1242
        %1246 = vrot.lane.b32.xlu0 %v1230, 126
        %v1247 = vpop.permute.xlu0 %1246
        %1248 = vrot.lane.b32.xlu0 %v1231, 126
        %v1249 = vpop.permute.xlu0 %1248
        %1250 = vrot.lane.b32.xlu0 %v1232, 126
        %v1251 = vpop.permute.xlu0 %1250
        %vm1252 = vcmask 1031168
        %v1253 = vsel %vm1252, %v1247, %v1249
        %v1254 = vsel %vm1252, %v1249, %v1251
        %1255 = vrot.lane.b32.xlu0 %v1231, 125
        %v1256 = vpop.permute.xlu0 %1255
        %1257 = vrot.lane.b32.xlu0 %v1232, 125
        %v1258 = vpop.permute.xlu0 %1257
        %vm1259 = vcmask 1022976
        %v1260 = vsel %vm1259, %v1256, %v1258
        %1262 = vrot.lane.b32.xlu0 %v1231, 124
        %v1263 = vpop.permute.xlu0 %1262
        %1264 = vrot.lane.b32.xlu0 %v1232, 124
        %v1265 = vpop.permute.xlu0 %1264
        %1266 = vrot.lane.b32.xlu0 %v1233, 124
        %v1267 = vpop.permute.xlu0 %1266
        %vm1268 = vcmask 1014784
        %v1269 = vsel %vm1268, %v1263, %v1265
        %v1270 = vsel %vm1268, %v1265, %v1267
        %1271 = vrot.lane.b32.xlu0 %v1231, 123
        %v1272 = vpop.permute.xlu0 %1271
        %1273 = vrot.lane.b32.xlu0 %v1232, 123
        %v1274 = vpop.permute.xlu0 %1273
        %1275 = vrot.lane.b32.xlu0 %v1233, 123
        %v1276 = vpop.permute.xlu0 %1275
        %vm1277 = vcmask 1006592
        %v1278 = vsel %vm1277, %v1272, %v1274
        %v1279 = vsel %vm1277, %v1274, %v1276
        %1280 = vrot.lane.b32.xlu0 %v1231, 122
        %v1281 = vpop.permute.xlu0 %1280
        %1282 = vrot.lane.b32.xlu0 %v1232, 122
        %v1283 = vpop.permute.xlu0 %1282
        %1284 = vrot.lane.b32.xlu0 %v1233, 122
        %v1285 = vpop.permute.xlu0 %1284
        %vm1286 = vcmask 998400
        %v1287 = vsel %vm1286, %v1281, %v1283
        %v1288 = vsel %vm1286, %v1283, %v1285
        %v1289 = vld [vmem:[%s2] sm:$0xf]
        %v1290 = vld [vmem:[%s2 + $0x4] sm:$0xf]
        %1291 = vset.pattern.permute.xlu0 4
        %1292 = vperm.xlu0 %1291, %v304
        %v1293 = vpop.permute.xlu0 %1292
        %1295 = vset.pattern.permute.xlu0 4
        %1296 = vperm.xlu0 %1295, %v305
        %v1297 = vpop.permute.xlu0 %1296
        %v1301 = vunpack.c.l.b16 %v1289
        %v1302 = vunpack.c.l.b16 %v1290
        %v1303 = vpack.c.b16 %v1302, %v1301
        %1304 = vrot.lane.b32.xlu0 %v1230, 3
        %v1305 = vpop.permute.xlu0 %1304
        %1306 = vrot.lane.b32.xlu0 %v1231, 3
        %v1307 = vpop.permute.xlu0 %1306
        %1308 = vrot.lane.b32.xlu0 %v1232, 3
        %v1309 = vpop.permute.xlu0 %1308
        %1310 = vrot.lane.b32.xlu0 %v1244, 3
        %v1311 = vpop.permute.xlu0 %1310
        %1312 = vrot.lane.b32.xlu0 %v1245, 3
        %v1313 = vpop.permute.xlu0 %1312
        %1314 = vrot.lane.b32.xlu0 %v1242, 3
        %v1315 = vpop.permute.xlu0 %1314
        %1316 = vrot.lane.b32.xlu0 %v1253, 3
        %v1317 = vpop.permute.xlu0 %1316
        %1318 = vrot.lane.b32.xlu0 %v1254, 3
        %v1319 = vpop.permute.xlu0 %1318
        %1320 = vrot.lane.b32.xlu0 %v1251, 3
        %v1321 = vpop.permute.xlu0 %1320
        %1322 = vrot.lane.b32.xlu0 %v1256, 3
        %v1323 = vpop.permute.xlu0 %1322
        %1324 = vrot.lane.b32.xlu0 %v1260, 3
        %v1325 = vpop.permute.xlu0 %1324
        %1326 = vrot.lane.b32.xlu0 %v1258, 3
        %v1327 = vpop.permute.xlu0 %1326
        %1328 = vrot.lane.b32.xlu0 %v1263, 3
        %v1329 = vpop.permute.xlu0 %1328
        %1330 = vrot.lane.b32.xlu0 %v1269, 3
        %v1331 = vpop.permute.xlu0 %1330
        %1332 = vrot.lane.b32.xlu0 %v1270, 3
        %v1333 = vpop.permute.xlu0 %1332
        %1334 = vrot.lane.b32.xlu0 %v1272, 3
        %v1335 = vpop.permute.xlu0 %1334
        %1336 = vrot.lane.b32.xlu0 %v1278, 3
        %v1337 = vpop.permute.xlu0 %1336
        %1338 = vrot.lane.b32.xlu0 %v1279, 3
        %v1339 = vpop.permute.xlu0 %1338
        %1340 = vrot.lane.b32.xlu0 %v1281, 3
        %v1341 = vpop.permute.xlu0 %1340
        %1342 = vrot.lane.b32.xlu0 %v1287, 3
        %v1343 = vpop.permute.xlu0 %1342
        %1344 = vrot.lane.b32.xlu0 %v1288, 3
        %v1345 = vpop.permute.xlu0 %1344
        %vm1346 = vcmask 23552
        %v1347 = vsel %vm1346, %v1305, %v1307
        %v1348 = vsel %vm1346, %v1307, %v1309
        %v1349 = vsel %vm1346, %v1311, %v1313
        %v1350 = vsel %vm1346, %v1313, %v1315
        %v1351 = vsel %vm1346, %v1317, %v1319
        %v1352 = vsel %vm1346, %v1319, %v1321
        %v1353 = vsel %vm1346, %v1323, %v1325
        %v1354 = vsel %vm1346, %v1325, %v1327
        %v1355 = vsel %vm1346, %v1329, %v1331
        %v1356 = vsel %vm1346, %v1331, %v1333
        %v1357 = vsel %vm1346, %v1335, %v1337
        %v1358 = vsel %vm1346, %v1337, %v1339
        %v1359 = vsel %vm1346, %v1341, %v1343
        %v1360 = vsel %vm1346, %v1343, %v1345
        %vm1375 = vcmask 916480
        %v1377 = vsel %vm1375, %v1303, 0
        %1379 = vmatprep.subr.bf16.mxu0 %v1348
        %1380 = vmatpush1.bf16.msra.mxu0 %v1347
        %1381 = vmatprep.subr.bf16.mxu0 %v1350
        %1382 = vmatpush1.bf16.msra.mxu0 %v1349
        %1383 = vmatprep.subr.bf16.mxu0 %v1352
        %1384 = vmatpush1.bf16.msra.mxu0 %v1351
        %1385 = vmatprep.subr.bf16.mxu0 %v1354
        %1386 = vmatpush1.bf16.msra.mxu0 %v1353
        %1387 = vmatprep.subr.bf16.mxu0 %v1356
        %1388 = vmatpush1.bf16.msra.mxu0 %v1355
        %1389 = vmatprep.subr.bf16.mxu0 %v1358
        %1390 = vmatpush1.bf16.msra.mxu0 %v1357
        %1391 = vmatprep.subr.bf16.mxu0 %v1360
        %1392 = vmatpush1.bf16.msra.mxu0 %v1359
        %1393 = vmatprep.subr.bf16.mxu0 0
        %1394 = vmatpush1.bf16.msra.mxu0 0
        %1395 = vmatprep.subr.bf16.mxu0 0
        %1396 = vmatpush1.bf16.msra.mxu0 0
        %1397 = vmatprep.subr.bf16.mxu0 0
        %1398 = vmatpush1.bf16.msra.mxu0 0
        %1399 = vmatprep.subr.bf16.mxu0 0
        %1400 = vmatpush1.bf16.msra.mxu0 0
        %1401 = vmatprep.subr.bf16.mxu0 0
        %1402 = vmatpush1.bf16.msra.mxu0 0
        %1403 = vmatprep.subr.bf16.mxu0 0
        %1404 = vmatpush1.bf16.msra.mxu0 0
        %1405 = vmatprep.subr.bf16.mxu0 0
        %1406 = vmatpush1.bf16.msra.mxu0 0
        %1407 = vmatprep.subr.bf16.mxu0 0
        %1408 = vmatpush1.bf16.msra.mxu0 0
        %1409 = vmatprep.subr.bf16.mxu0 0
        %1410 = vmatpush1.bf16.msra.mxu0 0
        %1411 = vmatprep.mubr.bf16.mxu0 0
        %1412 = vmatmul.mubr.bf16.gmra.mrb[0].mxu0 %v1377
        %v1413 = vpop.f32.mrb[0].mxu0
        %v1414 = vadd.f32 %v1293, %v1413
        %v1415 = vpop.f32.mrb[0].mxu0
        %v1416 = vadd.f32 %v1293, %v1415
        %v1417 = vpop.f32.mrb[0].mxu0
        %v1418 = vadd.f32 %v1297, %v1417
        %v1419 = vpop.f32.mrb[0].mxu0
        %v1420 = vadd.f32 %v1297, %v1419
        %1421 = vdwg.mxu0
        %1422 = vset.pattern.permute.xlu0 2
        %1423 = vperm.xlu0 %1422, %v304
        %v1424 = vpop.permute.xlu0 %1423
        %1426 = vset.pattern.permute.xlu0 2
        %1427 = vperm.xlu0 %1426, %v305
        %v1428 = vpop.permute.xlu0 %1427
        %v1430 = vmul.f32 %v1424, %v1414
        %v1431 = vmul.f32 %v1424, %v1416
        %v1432 = vmul.f32 %v1428, %v1418
        %v1433 = vmul.f32 %v1428, %v1420
        %v1434 = vand.u32 2147483647, %v1430
        %vm1435 = vcmp.le.f32.partialorder %v1434, 0.7853982
        %vm1436 = vcmp.lt.s32.totalorder %v1430, 0
        %v1437 = vand.u32 %v1430, 2139095040
        %v1438 = vshrl.u32 %v1437, 23
        %v1439 = vsub.s32 %v1438, 127
        %v1440 = vand.u32 2147483647, %v1430
        %v1441 = vand.u32 %v1440, 8388607
        %v1442 = vor.u32 %v1441, 8388608
        %v1443 = vsub.s32 0, %v1442
        %v1444 = vadd.s32 %v1439, 1
        %vm1445 = vcmp.gt.s32.totalorder %v1444, 0
        %v1446 = vsel %vm1445, %v1444, 0
        %v1447 = vshrl.u32 %v1446, 5
        %v1448 = vand.u32 %v1446, 31
        %v1449 = vsub.s32 32, %v1448
        %v1450 = vshrl.u32 683565275, %v1449
        %v1451 = vshll.u32 683565275, %v1448
        %v1452 = vshrl.u32 2475754826, %v1449
        %v1453 = vor.u32 %v1451, %v1452
        %v1454 = vshll.u32 2475754826, %v1448
        %v1455 = vshrl.u32 2131351028, %v1449
        %v1456 = vor.u32 %v1454, %v1455
        %v1457 = vshll.u32 2131351028, %v1448
        %v1458 = vshrl.u32 2102212464, %v1449
        %v1459 = vor.u32 %v1457, %v1458
        %v1460 = vshll.u32 2102212464, %v1448
        %v1461 = vshrl.u32 920167782, %v1449
        %v1462 = vor.u32 %v1460, %v1461
        %v1463 = vshll.u32 920167782, %v1448
        %v1464 = vshrl.u32 1326507024, %v1449
        %v1465 = vor.u32 %v1463, %v1464
        %vm1466 = vcmp.lt.s32.totalorder %v1447, 1
        %vm1467 = vcmp.lt.s32.totalorder %v1447, 2
        %vm1468 = vcmp.lt.s32.totalorder %v1447, 3
        %vm1469 = vcmp.lt.s32.totalorder %v1447, 4
        %v1470 = vsel %vm1466, %v1450, %v1453
        %v1471 = vsel %vm1469, %v1459, 2102212464
        %v1472 = vsel %vm1468, %v1456, %v1471
        %v1473 = vsel %vm1467, %v1470, %v1472
        %v1474 = vsel %vm1466, %v1453, %v1456
        %v1475 = vsel %vm1469, %v1462, 920167782
        %v1476 = vsel %vm1468, %v1459, %v1475
        %v1477 = vsel %vm1467, %v1474, %v1476
        %v1478 = vsel %vm1466, %v1456, %v1459
        %v1479 = vsel %vm1469, %v1465, 1326507024
        %v1480 = vsel %vm1468, %v1462, %v1479
        %v1481 = vsel %vm1467, %v1478, %v1480
        %v1482 = vshll.u32 %v1442, 8
        %v1483 = vmul.u32.u64.compose %v1482, %v1481
        %v1484 = vextract.low.u32 %v1483
        %v1485 = vextract.high.u32 %v1483
        %v1486 = vmul.u32.u64.compose %v1482, %v1477
        %v1487 = vextract.low.u32 %v1486
        %v1488 = vextract.high.u32 %v1486
        %v1489 = vmul.u32 %v1482, %v1473
        %v1490 = vadd.s32 %v1485, %v1487
        %vm1491 = vc.u32 %v1485, %v1487
        %v1492 = vadd.s32 %v1488, 1
        %v1493 = vsel %vm1491, %v1492, %v1488
        %v1494 = vadd.s32 %v1489, %v1493
        %v1495 = vadd.s32 %v1494, 536870912
        %v1496 = vshrl.u32 %v1495, 30
        %v1497 = vshll.u32 %v1496, 30
        %v1498 = vsub.s32 %v1494, %v1497
        %vm1499 = vcmp.lt.s32.totalorder %v1498, 0
        %v1500 = vsub.s32 0, %v1498
        %v1501 = vsel %vm1499, %v1500, %v1498
        %v1502 = vclz %v1501
        %v1503 = vsub.s32 %v1502, 2
        %vm1504 = vcmp.gt.s32.totalorder 0, %v1503
        %v1505 = vsel %vm1504, 0, %v1503
        %v1506 = vsub.s32 32, %v1505
        %v1507 = vshll.u32 %v1498, %v1505
        %v1508 = vshrl.u32 %v1490, %v1506
        %v1509 = vor.u32 %v1507, %v1508
        %v1510 = vsub.s32 4294967266, %v1505
        %v1511 = vadd.s32 %v1510, 127
        %v1512 = vshll.u32 %v1511, 23
        %v1513 = vor.u32 4788187, %v1512
        %v1514 = vand.u32 2147483647, %v1513
        %v1516 = vcvt.s32.f32 %v1509
        %v1517 = vmul.f32 %v1516, %v1514
        %v1518 = vxor.u32 %v1517, 2147483648
        %v1519 = vsel %vm1436, %v1518, %v1517
        %v1520 = vsub.s32 4, %v1496
        %v1521 = vsel %vm1436, %v1520, %v1496
        %v1522 = vsel %vm1435, %v1430, %v1519
        %v1523 = vsel %vm1435, 0, %v1521
        %v1524 = vcosq.f32.pop %v1522
        %v1525 = vsinq.f32.pop %v1522
        %vm1526 = vweird.f32 %v1430
        %v1527 = vadd.s32 %v1523, 3
        %v1528 = vand.u32 %v1527, 3
        %vm1529 = vcmp.lt.s32.totalorder %v1528, 2
        %vm1530 = vcmp.eq.s32.totalorder %v1528, 0
        %v1531 = vxor.u32 %v1525, 2147483648
        %v1532 = vsel %vm1530, %v1524, %v1531
        %vm1533 = vcmp.eq.s32.totalorder %v1528, 2
        %v1534 = vxor.u32 %v1524, 2147483648
        %v1535 = vsel %vm1533, %v1534, %v1525
        %v1536 = vsel %vm1529, %v1532, %v1535
        %v1537 = vsel %vm1526, nan, %v1536
        %v1538 = vand.u32 2147483647, %v1431
        %vm1539 = vcmp.le.f32.partialorder %v1538, 0.7853982
        %vm1540 = vcmp.lt.s32.totalorder %v1431, 0
        %v1541 = vand.u32 %v1431, 2139095040
        %v1542 = vshrl.u32 %v1541, 23
        %v1543 = vsub.s32 %v1542, 127
        %v1544 = vand.u32 2147483647, %v1431
        %v1545 = vand.u32 %v1544, 8388607
        %v1546 = vor.u32 %v1545, 8388608
        %v1547 = vsub.s32 0, %v1546
        %v1548 = vadd.s32 %v1543, 1
        %vm1549 = vcmp.gt.s32.totalorder %v1548, 0
        %v1550 = vsel %vm1549, %v1548, 0
        %v1551 = vshrl.u32 %v1550, 5
        %v1552 = vand.u32 %v1550, 31
        %v1553 = vsub.s32 32, %v1552
        %v1554 = vshrl.u32 683565275, %v1553
        %v1555 = vshll.u32 683565275, %v1552
        %v1556 = vshrl.u32 2475754826, %v1553
        %v1557 = vor.u32 %v1555, %v1556
        %v1558 = vshll.u32 2475754826, %v1552
        %v1559 = vshrl.u32 2131351028, %v1553
        %v1560 = vor.u32 %v1558, %v1559
        %v1561 = vshll.u32 2131351028, %v1552
        %v1562 = vshrl.u32 2102212464, %v1553
        %v1563 = vor.u32 %v1561, %v1562
        %v1564 = vshll.u32 2102212464, %v1552
        %v1565 = vshrl.u32 920167782, %v1553
        %v1566 = vor.u32 %v1564, %v1565
        %v1567 = vshll.u32 920167782, %v1552
        %v1568 = vshrl.u32 1326507024, %v1553
        %v1569 = vor.u32 %v1567, %v1568
        %vm1570 = vcmp.lt.s32.totalorder %v1551, 1
        %vm1571 = vcmp.lt.s32.totalorder %v1551, 2
        %vm1572 = vcmp.lt.s32.totalorder %v1551, 3
        %vm1573 = vcmp.lt.s32.totalorder %v1551, 4
        %v1574 = vsel %vm1570, %v1554, %v1557
        %v1575 = vsel %vm1573, %v1563, 2102212464
        %v1576 = vsel %vm1572, %v1560, %v1575
        %v1577 = vsel %vm1571, %v1574, %v1576
        %v1578 = vsel %vm1570, %v1557, %v1560
        %v1579 = vsel %vm1573, %v1566, 920167782
        %v1580 = vsel %vm1572, %v1563, %v1579
        %v1581 = vsel %vm1571, %v1578, %v1580
        %v1582 = vsel %vm1570, %v1560, %v1563
        %v1583 = vsel %vm1573, %v1569, 1326507024
        %v1584 = vsel %vm1572, %v1566, %v1583
        %v1585 = vsel %vm1571, %v1582, %v1584
        %v1586 = vshll.u32 %v1546, 8
        %v1587 = vmul.u32.u64.compose %v1586, %v1585
        %v1588 = vextract.low.u32 %v1587
        %v1589 = vextract.high.u32 %v1587
        %v1590 = vmul.u32.u64.compose %v1586, %v1581
        %v1591 = vextract.low.u32 %v1590
        %v1592 = vextract.high.u32 %v1590
        %v1593 = vmul.u32 %v1586, %v1577
        %v1594 = vadd.s32 %v1589, %v1591
        %vm1595 = vc.u32 %v1589, %v1591
        %v1596 = vadd.s32 %v1592, 1
        %v1597 = vsel %vm1595, %v1596, %v1592
        %v1598 = vadd.s32 %v1593, %v1597
        %v1599 = vadd.s32 %v1598, 536870912
        %v1600 = vshrl.u32 %v1599, 30
        %v1601 = vshll.u32 %v1600, 30
        %v1602 = vsub.s32 %v1598, %v1601
        %vm1603 = vcmp.lt.s32.totalorder %v1602, 0
        %v1604 = vsub.s32 0, %v1602
        %v1605 = vsel %vm1603, %v1604, %v1602
        %v1606 = vclz %v1605
        %v1607 = vsub.s32 %v1606, 2
        %vm1608 = vcmp.gt.s32.totalorder 0, %v1607
        %v1609 = vsel %vm1608, 0, %v1607
        %v1610 = vsub.s32 32, %v1609
        %v1611 = vshll.u32 %v1602, %v1609
        %v1612 = vshrl.u32 %v1594, %v1610
        %v1613 = vor.u32 %v1611, %v1612
        %v1614 = vsub.s32 4294967266, %v1609
        %v1615 = vadd.s32 %v1614, 127
        %v1616 = vshll.u32 %v1615, 23
        %v1617 = vor.u32 4788187, %v1616
        %v1618 = vand.u32 2147483647, %v1617
        %v1620 = vcvt.s32.f32 %v1613
        %v1621 = vmul.f32 %v1620, %v1618
        %v1622 = vxor.u32 %v1621, 2147483648
        %v1623 = vsel %vm1540, %v1622, %v1621
        %v1624 = vsub.s32 4, %v1600
        %v1625 = vsel %vm1540, %v1624, %v1600
        %v1626 = vsel %vm1539, %v1431, %v1623
        %v1627 = vsel %vm1539, 0, %v1625
        %v1628 = vcosq.f32.pop %v1626
        %v1629 = vsinq.f32.pop %v1626
        %vm1630 = vweird.f32 %v1431
        %v1631 = vadd.s32 %v1627, 3
        %v1632 = vand.u32 %v1631, 3
        %vm1633 = vcmp.lt.s32.totalorder %v1632, 2
        %vm1634 = vcmp.eq.s32.totalorder %v1632, 0
        %v1635 = vxor.u32 %v1629, 2147483648
        %v1636 = vsel %vm1634, %v1628, %v1635
        %vm1637 = vcmp.eq.s32.totalorder %v1632, 2
        %v1638 = vxor.u32 %v1628, 2147483648
        %v1639 = vsel %vm1637, %v1638, %v1629
        %v1640 = vsel %vm1633, %v1636, %v1639
        %v1641 = vsel %vm1630, nan, %v1640
        %v1642 = vand.u32 2147483647, %v1432
        %vm1643 = vcmp.le.f32.partialorder %v1642, 0.7853982
        %vm1644 = vcmp.lt.s32.totalorder %v1432, 0
        %v1645 = vand.u32 %v1432, 2139095040
        %v1646 = vshrl.u32 %v1645, 23
        %v1647 = vsub.s32 %v1646, 127
        %v1648 = vand.u32 2147483647, %v1432
        %v1649 = vand.u32 %v1648, 8388607
        %v1650 = vor.u32 %v1649, 8388608
        %v1651 = vsub.s32 0, %v1650
        %v1652 = vadd.s32 %v1647, 1
        %vm1653 = vcmp.gt.s32.totalorder %v1652, 0
        %v1654 = vsel %vm1653, %v1652, 0
        %v1655 = vshrl.u32 %v1654, 5
        %v1656 = vand.u32 %v1654, 31
        %v1657 = vsub.s32 32, %v1656
        %v1658 = vshrl.u32 683565275, %v1657
        %v1659 = vshll.u32 683565275, %v1656
        %v1660 = vshrl.u32 2475754826, %v1657
        %v1661 = vor.u32 %v1659, %v1660
        %v1662 = vshll.u32 2475754826, %v1656
        %v1663 = vshrl.u32 2131351028, %v1657
        %v1664 = vor.u32 %v1662, %v1663
        %v1665 = vshll.u32 2131351028, %v1656
        %v1666 = vshrl.u32 2102212464, %v1657
        %v1667 = vor.u32 %v1665, %v1666
        %v1668 = vshll.u32 2102212464, %v1656
        %v1669 = vshrl.u32 920167782, %v1657
        %v1670 = vor.u32 %v1668, %v1669
        %v1671 = vshll.u32 920167782, %v1656
        %v1672 = vshrl.u32 1326507024, %v1657
        %v1673 = vor.u32 %v1671, %v1672
        %vm1674 = vcmp.lt.s32.totalorder %v1655, 1
        %vm1675 = vcmp.lt.s32.totalorder %v1655, 2
        %vm1676 = vcmp.lt.s32.totalorder %v1655, 3
        %vm1677 = vcmp.lt.s32.totalorder %v1655, 4
        %v1678 = vsel %vm1674, %v1658, %v1661
        %v1679 = vsel %vm1677, %v1667, 2102212464
        %v1680 = vsel %vm1676, %v1664, %v1679
        %v1681 = vsel %vm1675, %v1678, %v1680
        %v1682 = vsel %vm1674, %v1661, %v1664
        %v1683 = vsel %vm1677, %v1670, 920167782
        %v1684 = vsel %vm1676, %v1667, %v1683
        %v1685 = vsel %vm1675, %v1682, %v1684
        %v1686 = vsel %vm1674, %v1664, %v1667
        %v1687 = vsel %vm1677, %v1673, 1326507024
        %v1688 = vsel %vm1676, %v1670, %v1687
        %v1689 = vsel %vm1675, %v1686, %v1688
        %v1690 = vshll.u32 %v1650, 8
        %v1691 = vmul.u32.u64.compose %v1690, %v1689
        %v1692 = vextract.low.u32 %v1691
        %v1693 = vextract.high.u32 %v1691
        %v1694 = vmul.u32.u64.compose %v1690, %v1685
        %v1695 = vextract.low.u32 %v1694
        %v1696 = vextract.high.u32 %v1694
        %v1697 = vmul.u32 %v1690, %v1681
        %v1698 = vadd.s32 %v1693, %v1695
        %vm1699 = vc.u32 %v1693, %v1695
        %v1700 = vadd.s32 %v1696, 1
        %v1701 = vsel %vm1699, %v1700, %v1696
        %v1702 = vadd.s32 %v1697, %v1701
        %v1703 = vadd.s32 %v1702, 536870912
        %v1704 = vshrl.u32 %v1703, 30
        %v1705 = vshll.u32 %v1704, 30
        %v1706 = vsub.s32 %v1702, %v1705
        %vm1707 = vcmp.lt.s32.totalorder %v1706, 0
        %v1708 = vsub.s32 0, %v1706
        %v1709 = vsel %vm1707, %v1708, %v1706
        %v1710 = vclz %v1709
        %v1711 = vsub.s32 %v1710, 2
        %vm1712 = vcmp.gt.s32.totalorder 0, %v1711
        %v1713 = vsel %vm1712, 0, %v1711
        %v1714 = vsub.s32 32, %v1713
        %v1715 = vshll.u32 %v1706, %v1713
        %v1716 = vshrl.u32 %v1698, %v1714
        %v1717 = vor.u32 %v1715, %v1716
        %v1718 = vsub.s32 4294967266, %v1713
        %v1719 = vadd.s32 %v1718, 127
        %v1720 = vshll.u32 %v1719, 23
        %v1721 = vor.u32 4788187, %v1720
        %v1722 = vand.u32 2147483647, %v1721
        %v1724 = vcvt.s32.f32 %v1717
        %v1725 = vmul.f32 %v1724, %v1722
        %v1726 = vxor.u32 %v1725, 2147483648
        %v1727 = vsel %vm1644, %v1726, %v1725
        %v1728 = vsub.s32 4, %v1704
        %v1729 = vsel %vm1644, %v1728, %v1704
        %v1730 = vsel %vm1643, %v1432, %v1727
        %v1731 = vsel %vm1643, 0, %v1729
        %v1732 = vcosq.f32.pop %v1730
        %v1733 = vsinq.f32.pop %v1730
        %vm1734 = vweird.f32 %v1432
        %v1735 = vadd.s32 %v1731, 3
        %v1736 = vand.u32 %v1735, 3
        %vm1737 = vcmp.lt.s32.totalorder %v1736, 2
        %vm1738 = vcmp.eq.s32.totalorder %v1736, 0
        %v1739 = vxor.u32 %v1733, 2147483648
        %v1740 = vsel %vm1738, %v1732, %v1739
        %vm1741 = vcmp.eq.s32.totalorder %v1736, 2
        %v1742 = vxor.u32 %v1732, 2147483648
        %v1743 = vsel %vm1741, %v1742, %v1733
        %v1744 = vsel %vm1737, %v1740, %v1743
        %v1745 = vsel %vm1734, nan, %v1744
        %v1746 = vand.u32 2147483647, %v1433
        %vm1747 = vcmp.le.f32.partialorder %v1746, 0.7853982
        %vm1748 = vcmp.lt.s32.totalorder %v1433, 0
        %v1749 = vand.u32 %v1433, 2139095040
        %v1750 = vshrl.u32 %v1749, 23
        %v1751 = vsub.s32 %v1750, 127
        %v1752 = vand.u32 2147483647, %v1433
        %v1753 = vand.u32 %v1752, 8388607
        %v1754 = vor.u32 %v1753, 8388608
        %v1755 = vsub.s32 0, %v1754
        %v1756 = vadd.s32 %v1751, 1
        %vm1757 = vcmp.gt.s32.totalorder %v1756, 0
        %v1758 = vsel %vm1757, %v1756, 0
        %v1759 = vshrl.u32 %v1758, 5
        %v1760 = vand.u32 %v1758, 31
        %v1761 = vsub.s32 32, %v1760
        %v1762 = vshrl.u32 683565275, %v1761
        %v1763 = vshll.u32 683565275, %v1760
        %v1764 = vshrl.u32 2475754826, %v1761
        %v1765 = vor.u32 %v1763, %v1764
        %v1766 = vshll.u32 2475754826, %v1760
        %v1767 = vshrl.u32 2131351028, %v1761
        %v1768 = vor.u32 %v1766, %v1767
        %v1769 = vshll.u32 2131351028, %v1760
        %v1770 = vshrl.u32 2102212464, %v1761
        %v1771 = vor.u32 %v1769, %v1770
        %v1772 = vshll.u32 2102212464, %v1760
        %v1773 = vshrl.u32 920167782, %v1761
        %v1774 = vor.u32 %v1772, %v1773
        %v1775 = vshll.u32 920167782, %v1760
        %v1776 = vshrl.u32 1326507024, %v1761
        %v1777 = vor.u32 %v1775, %v1776
        %vm1778 = vcmp.lt.s32.totalorder %v1759, 1
        %vm1779 = vcmp.lt.s32.totalorder %v1759, 2
        %vm1780 = vcmp.lt.s32.totalorder %v1759, 3
        %vm1781 = vcmp.lt.s32.totalorder %v1759, 4
        %v1782 = vsel %vm1778, %v1762, %v1765
        %v1783 = vsel %vm1781, %v1771, 2102212464
        %v1784 = vsel %vm1780, %v1768, %v1783
        %v1785 = vsel %vm1779, %v1782, %v1784
        %v1786 = vsel %vm1778, %v1765, %v1768
        %v1787 = vsel %vm1781, %v1774, 920167782
        %v1788 = vsel %vm1780, %v1771, %v1787
        %v1789 = vsel %vm1779, %v1786, %v1788
        %v1790 = vsel %vm1778, %v1768, %v1771
        %v1791 = vsel %vm1781, %v1777, 1326507024
        %v1792 = vsel %vm1780, %v1774, %v1791
        %v1793 = vsel %vm1779, %v1790, %v1792
        %v1794 = vshll.u32 %v1754, 8
        %v1795 = vmul.u32.u64.compose %v1794, %v1793
        %v1796 = vextract.low.u32 %v1795
        %v1797 = vextract.high.u32 %v1795
        %v1798 = vmul.u32.u64.compose %v1794, %v1789
        %v1799 = vextract.low.u32 %v1798
        %v1800 = vextract.high.u32 %v1798
        %v1801 = vmul.u32 %v1794, %v1785
        %v1802 = vadd.s32 %v1797, %v1799
        %vm1803 = vc.u32 %v1797, %v1799
        %v1804 = vadd.s32 %v1800, 1
        %v1805 = vsel %vm1803, %v1804, %v1800
        %v1806 = vadd.s32 %v1801, %v1805
        %v1807 = vadd.s32 %v1806, 536870912
        %v1808 = vshrl.u32 %v1807, 30
        %v1809 = vshll.u32 %v1808, 30
        %v1810 = vsub.s32 %v1806, %v1809
        %vm1811 = vcmp.lt.s32.totalorder %v1810, 0
        %v1812 = vsub.s32 0, %v1810
        %v1813 = vsel %vm1811, %v1812, %v1810
        %v1814 = vclz %v1813
        %v1815 = vsub.s32 %v1814, 2
        %vm1816 = vcmp.gt.s32.totalorder 0, %v1815
        %v1817 = vsel %vm1816, 0, %v1815
        %v1818 = vsub.s32 32, %v1817
        %v1819 = vshll.u32 %v1810, %v1817
        %v1820 = vshrl.u32 %v1802, %v1818
        %v1821 = vor.u32 %v1819, %v1820
        %v1822 = vsub.s32 4294967266, %v1817
        %v1823 = vadd.s32 %v1822, 127
        %v1824 = vshll.u32 %v1823, 23
        %v1825 = vor.u32 4788187, %v1824
        %v1826 = vand.u32 2147483647, %v1825
        %v1828 = vcvt.s32.f32 %v1821
        %v1829 = vmul.f32 %v1828, %v1826
        %v1830 = vxor.u32 %v1829, 2147483648
        %v1831 = vsel %vm1748, %v1830, %v1829
        %v1832 = vsub.s32 4, %v1808
        %v1833 = vsel %vm1748, %v1832, %v1808
        %v1834 = vsel %vm1747, %v1433, %v1831
        %v1835 = vsel %vm1747, 0, %v1833
        %v1836 = vcosq.f32.pop %v1834
        %v1837 = vsinq.f32.pop %v1834
        %vm1838 = vweird.f32 %v1433
        %v1839 = vadd.s32 %v1835, 3
        %v1840 = vand.u32 %v1839, 3
        %vm1841 = vcmp.lt.s32.totalorder %v1840, 2
        %vm1842 = vcmp.eq.s32.totalorder %v1840, 0
        %v1843 = vxor.u32 %v1837, 2147483648
        %v1844 = vsel %vm1842, %v1836, %v1843
        %vm1845 = vcmp.eq.s32.totalorder %v1840, 2
        %v1846 = vxor.u32 %v1836, 2147483648
        %v1847 = vsel %vm1845, %v1846, %v1837
        %v1848 = vsel %vm1841, %v1844, %v1847
        %v1849 = vsel %vm1838, nan, %v1848
        %v1850 = vmul.f32 %v1537, %v1537
        %v1851 = vmul.f32 %v1641, %v1641
        %v1852 = vmul.f32 %v1745, %v1745
        %v1853 = vmul.f32 %v1849, %v1849
        %1854 = vset.pattern.permute.xlu0 3
        %1855 = vperm.xlu0 %1854, %v304
        %v1856 = vpop.permute.xlu0 %1855
        %1858 = vset.pattern.permute.xlu0 3
        %1859 = vperm.xlu0 %1858, %v305
        %v1860 = vpop.permute.xlu0 %1859
        %v1862 = vmul.f32 %v1856, %v1850
        %v1863 = vmul.f32 %v1856, %v1851
        %v1864 = vmul.f32 %v1860, %v1852
        %v1865 = vmul.f32 %v1860, %v1853
        %v1866 = vadd.f32 %v1414, %v1862
        %v1867 = vadd.f32 %v1416, %v1863
        %v1868 = vadd.f32 %v1418, %v1864
        %v1869 = vadd.f32 %v1420, %v1865
        %v1870 = vpack.c.bf16 %v1868, %v1866
        %v1871 = vpack.c.bf16 %v1869, %v1867
        %v1872 = vld [vmem:[#allocation3] sm:$0xf]
        %v1873 = vld [vmem:[#allocation3 + $0x4] sm:$0xf]
        %1874 = vset.pattern.permute.xlu0 5
        %1875 = vperm.xlu0 %1874, %v304
        %v1876 = vpop.permute.xlu0 %1875
        %1878 = vset.pattern.permute.xlu0 5
        %1879 = vperm.xlu0 %1878, %v305
        %v1880 = vpop.permute.xlu0 %1879
        %v1884 = vunpack.c.l.b16 %v1872
        %v1885 = vunpack.c.l.b16 %v1873
        %v1886 = vpack.c.b16 %v1885, %v1884
        %vm1887 = vcmask 130048
        %v1889 = vsel %vm1887, %v1886, 0
        %1891 = vmatprep.subr.bf16.mxu0 %v1871
        %1892 = vmatpush1.bf16.msra.mxu0 %v1870
        %1893 = vmatprep.subr.bf16.mxu0 0
        %1894 = vmatpush1.bf16.msra.mxu0 0
        %1895 = vmatprep.subr.bf16.mxu0 0
        %1896 = vmatpush1.bf16.msra.mxu0 0
        %1897 = vmatprep.subr.bf16.mxu0 0
        %1898 = vmatpush1.bf16.msra.mxu0 0
        %1899 = vmatprep.subr.bf16.mxu0 0
        %1900 = vmatpush1.bf16.msra.mxu0 0
        %1901 = vmatprep.subr.bf16.mxu0 0
        %1902 = vmatpush1.bf16.msra.mxu0 0
        %1903 = vmatprep.subr.bf16.mxu0 0
        %1904 = vmatpush1.bf16.msra.mxu0 0
        %1905 = vmatprep.subr.bf16.mxu0 0
        %1906 = vmatpush1.bf16.msra.mxu0 0
        %1907 = vmatprep.subr.bf16.mxu0 0
        %1908 = vmatpush1.bf16.msra.mxu0 0
        %1909 = vmatprep.subr.bf16.mxu0 0
        %1910 = vmatpush1.bf16.msra.mxu0 0
        %1911 = vmatprep.subr.bf16.mxu0 0
        %1912 = vmatpush1.bf16.msra.mxu0 0
        %1913 = vmatprep.subr.bf16.mxu0 0
        %1914 = vmatpush1.bf16.msra.mxu0 0
        %1915 = vmatprep.subr.bf16.mxu0 0
        %1916 = vmatpush1.bf16.msra.mxu0 0
        %1917 = vmatprep.subr.bf16.mxu0 0
        %1918 = vmatpush1.bf16.msra.mxu0 0
        %1919 = vmatprep.subr.bf16.mxu0 0
        %1920 = vmatpush1.bf16.msra.mxu0 0
        %1921 = vmatprep.subr.bf16.mxu0 0
        %1922 = vmatpush1.bf16.msra.mxu0 0
        %1923 = vmatprep.mubr.bf16.mxu0 0
        %1924 = vmatmul.mubr.bf16.gmra.mrb[0].mxu0 %v1889
        %v1925 = vpop.f32.mrb[0].mxu0
        %v1926 = vadd.f32 %v1876, %v1925
        %v1927 = vpop.f32.mrb[0].mxu0
        %v1928 = vadd.f32 %v1876, %v1927
        %v1929 = vpop.f32.mrb[0].mxu0
        %v1930 = vadd.f32 %v1880, %v1929
        %v1931 = vpop.f32.mrb[0].mxu0
        %v1932 = vadd.f32 %v1880, %v1931
        %1933 = vdwg.mxu0
        %v1934 = vadd.f32 %v306, %v1926
        %v1935 = vadd.f32 %v307, %v1928
        %v1936 = vadd.f32 %v308, %v1930
        %v1937 = vadd.f32 %v309, %v1932
        %1938 = vst [vmem:[%s282] sm:$0xff] %v1934
        %1939 = vst [vmem:[%s282 + $0x8] sm:$0xff] %v1935
        %1940 = vst [vmem:[%s282 + $0x10] sm:$0xff] %v1936
        %1941 = vst [vmem:[%s282 + $0x18] sm:$0xff] %v1937
        %s1942 = sand.u32 %s161, 1
        %s1943 = scalar_lea.sflag [#allocation5], %s1942
        %s1944 = sand.u32 %s161, 1
        %s1945 = smul.addr %s1944, 32
        %s1946 = scalar_lea.vmem [#allocation6], %s1945
        // Predicated region
        $region45: #{tpu_custom_call.1} parent=39 // pred_check
          %p1947 = pneg %p171
        $region46: #{tpu_custom_call.1} parent=39 // pred_check_branch
          %1949 = sbr.rel (%p1947) target = $region48
        $region47: #{tpu_custom_call.1} parent=39 // pred_region
          %s1950 = smul.u32 2, %s25
          %s1952 = ssub.s32 512, 512
          %1953 = vsyncadd %s1943, %s1952
          %s1954 = smul.addr %s24, 4
          %s1955 = sadd.s32 %s1950, %s1954
          %s1956 = smul.addr %s1955, 128
          %s1957 = scalar_lea.hbm %s5, %s1956
          %s1958 = sshll.u32 %s1946, 4
          %s1959 = int_to_ptr.vmem [resolvable:$true] %s1958
          %1964 = dma.vmem_to_hbm [thread:$0]  %s1959, 512, %s1957, %s1943, 256, 256, 16
        $region48: #{tpu_custom_call.1} parent=39 // pred_fallthru
          _
      $region40: #{tpu_custom_call.1} parent=5 // pred_fallthru
        _
      %p1965 = scmp.le.s32.totalorder 2, %s15
      // Predicated region
      $region49: #{tpu_custom_call.1} parent=5 // pred_check
        %p1966 = pneg %p1965
      $region50: #{tpu_custom_call.1} parent=5 // pred_check_branch
        %1968 = sbr.rel (%p1966) target = $region52
      $region51: #{tpu_custom_call.1} parent=5 // pred_region
        %s1969 = ssub.s32 %s15, 2
        // Predicated region
        $region53: #{tpu_custom_call.1} parent=51 // pred_check
          %p1970 = pneg %p177
        $region54: #{tpu_custom_call.1} parent=51 // pred_check_branch
          %1972 = sbr.rel (%p1970) target = $region56
        $region55: #{tpu_custom_call.1} parent=51 // pred_region
          %s1973 = sand.u32 %s162, 1
          %s1974 = scalar_lea.sflag [#allocation5], %s1973
          %s1975 = sand.u32 %s162, 1
          %s1976 = smul.addr %s1975, 32
          %s1977 = scalar_lea.vmem [#allocation6], %s1976
          %1978 = dma.done %s1974, 512
        $region56: #{tpu_custom_call.1} parent=51 // pred_fallthru
          _
      $region52: #{tpu_custom_call.1} parent=5 // pred_fallthru
        _
    $region6: #{tpu_custom_call.1} parent=1 // loop_footer
      %s19 = sadd.s32 1, %s15
    $region7: #{tpu_custom_call.1} parent=1 // loop_footer_branch
      %14 = sbr.rel target = $region3
    $region8: #{tpu_custom_call.1} parent=1 // loop_exit
      _
    %1979 = vsyncpa [#allocation4], 1
    %s1980 = scalar_lea.sflag [#allocation4], 1
    %1981 = vsyncpa %s1980, 1
    %1982 = vsyncpa [#allocation5], 1
    %s1983 = scalar_lea.sflag [#allocation5], 1
    %1984 = vsyncpa %s1983, 1

</llo_original>
